<compile_context>
chip_gen: v5e
topology: v5e:2x2
jax: 0.10.0
libtpu: 0.0.40
codegen_flags: <defaults>
</compile_context>

<pallas_src>
import jax
import jax.numpy as jnp
from jax import lax
from jax.experimental import pallas as pl
from jax.experimental.pallas import tpu as pltpu

# ---- model config (small, consistent with the module's __init__) ----
BATCH    = 2
SEQ      = 8      # l
D_MODEL  = 16
D_INNER  = 32
D_STATE  = 4      # n
DT_RANK  = 2
D_CONV   = 4
EPS      = 1e-5
DTYPE    = jnp.float32

BL  = SEQ * BATCH                 # 16 rows fed to every matmul
PAD = (D_CONV - 1) * BATCH        # causal left-pad in seq-major rows


def _silu_kernel(x):
    # x * sigmoid(x); the divide goes to the EUP via approximate reciprocal.
    return x * pl.reciprocal(1.0 + jnp.exp(-x), approx=True)


def _softplus(x):
    # matches torch.nn.functional.softplus (beta=1, threshold=20)
    return jnp.where(x > 20.0, x, jnp.log1p(jnp.exp(jnp.minimum(x, 20.0))))


# -------------------------------------------------------------------------
# Pallas kernel: entire ResidualBlock forward, all batches, one invocation.
# -------------------------------------------------------------------------
def residual_block_kernel(
    xr_ref,      # (BL, D_MODEL)        x as seq-major rows (row = l*BATCH + b)
    nw_ref,      # (1, D_MODEL)         RMSNorm weight
    winx_ref,    # (D_MODEL, D_INNER)   in_proj weight, x half
    binx_ref,    # (1, D_INNER)
    winr_ref,    # (D_MODEL, D_INNER)   in_proj weight, res half
    binr_ref,    # (1, D_INNER)
    wconv_ref,   # (D_CONV, D_INNER)    depthwise conv weight (tap-major)
    bconv_ref,   # (1, D_INNER)
    wdelta_ref,  # (D_INNER, D_INNER)   fused wx_dt @ wdt
    bdt_ref,     # (1, D_INNER)
    wxbc_ref,    # (D_INNER, 2*D_STATE) fused x_proj split [B | C]
    negAT_ref,   # (D_STATE, D_INNER)   precomputed -exp(A_log)^T
    dparam_ref,  # (1, D_INNER)         D
    wout_ref,    # (D_INNER, D_MODEL)   out_proj weight
    bout_ref,    # (1, D_MODEL)         out_proj bias
    o_ref,       # (BL, D_MODEL)        output, seq-major rows
    xpad_ref,    # scratch VMEM (PAD + BL, D_INNER)   zero-padded conv input
    dA_ref,      # scratch VMEM (D_STATE, BL, D_INNER)
    dBu_ref,     # scratch VMEM (D_STATE, BL, D_INNER)
    st_ref,      # scratch VMEM (D_STATE, BL, D_INNER) states at every step
):
    x = xr_ref[...]                                             # (BL, D_MODEL)

    # ---- RMSNorm ----
    ms = jnp.mean(x * x, axis=-1, keepdims=True)                # (BL, 1)
    xn = x * lax.rsqrt(ms + EPS) * nw_ref[...]                  # (BL, D_MODEL)

    # ---- in_proj: two well-shaped dots ----
    xi  = jnp.dot(xn, winx_ref[...], preferred_element_type=jnp.float32) + binx_ref[...]
    res = jnp.dot(xn, winr_ref[...], preferred_element_type=jnp.float32) + binr_ref[...]

    # ---- causal depthwise conv: zero-padded scratch + shifted sublane slices.
    #      Rows are seq-major interleaved, so a causal shift of s sequence steps
    #      is a shift of s*BATCH rows and never crosses batch boundaries.
    #      No MXU matmuls, no (BL,BL) iota/compare work.
    xpad_ref[pl.ds(0, PAD), :] = jnp.zeros((PAD, D_INNER), jnp.float32)
    xpad_ref[pl.ds(PAD, BL), :] = xi
    conv = bconv_ref[...]                                       # (1, D_INNER) -> bcast
    for k in range(D_CONV):
        conv = conv + xpad_ref[pl.ds(k * BATCH, BL), :] * wconv_ref[k:k + 1, :]
    x_act = _silu_kernel(conv)                                  # (BL, D_INNER)

    # ---- SSM parameter projections: fused dt chain + fused B|C dot ----
    delta = _softplus(
        jnp.dot(x_act, wdelta_ref[...], preferred_element_type=jnp.float32)
        + bdt_ref[...]
    )                                                           # (BL, D_INNER)
    bc = jnp.dot(x_act, wxbc_ref[...], preferred_element_type=jnp.float32)  # (BL, 2N)

    # ---- hoisted scan coefficients (exp / deltaB_u out of the recurrence),
    #      staged in VMEM scratch so they don't stay live across the scan ----
    du = delta * x_act                                          # (BL, D_INNER)
    for n in range(D_STATE):
        dA_ref[n]  = jnp.exp(delta * negAT_ref[n:n + 1, :])     # (BL, D_INNER)
        dBu_ref[n] = du * bc[:, n:n + 1]                        # B column n, lane-bcast

    # ---- serial selective scan: one elementwise FMA per state chain per step,
    #      batch-vectorized (SEQ=8 serial steps).  No MXU work inside the loop.
    states = [jnp.zeros((BATCH, D_INNER), jnp.float32) for _ in range(D_STATE)]
    for i in range(SEQ):
        r0 = i * BATCH                                          # static offset
        for n in range(D_STATE):
            states[n] = (dA_ref[n, pl.ds(r0, BATCH), :] * states[n]
                         + dBu_ref[n, pl.ds(r0, BATCH), :])
            st_ref[n, pl.ds(r0, BATCH), :] = states[n]

    # ---- hoisted C·state contraction (elementwise + add over the 4 chains) ----
    y = bc[:, D_STATE:D_STATE + 1] * st_ref[0]                  # (BL, D_INNER)
    for n in range(1, D_STATE):
        y = y + bc[:, D_STATE + n:D_STATE + n + 1] * st_ref[n]

    skip = x_act * dparam_ref[...]                              # u * D
    gate = _silu_kernel(res)
    yg = (y + skip) * gate                                      # (BL, D_INNER)

    # ---- single out_proj matmul + bias + residual ----
    out = (jnp.dot(yg, wout_ref[...], preferred_element_type=jnp.float32)
           + bout_ref[...] + x)                                 # (BL, D_MODEL)
    o_ref[...] = out.astype(o_ref.dtype)


# -------------------------------------------------------------------------
# One-time parameter prep (kept OUT of the per-call jitted forward).
# -------------------------------------------------------------------------
def prepare_params(params):
    (nw, win, bin_, wconv, bconv, wx, wdt, bdt, alogT, dparam, wout, bout) = params
    win_x, win_r = win[:, :D_INNER], win[:, D_INNER:]
    bin_x, bin_r = bin_[:, :D_INNER], bin_[:, D_INNER:]
    w_delta = wx[:, :DT_RANK] @ wdt                 # exact fusion of x_proj(dt)∘dt_proj
    wx_bc   = wx[:, DT_RANK:]                       # (D_INNER, 2*D_STATE): [B | C]
    negA_T  = -jnp.exp(alogT)                       # (D_STATE, D_INNER)
    return (nw, win_x, bin_x, win_r, bin_r, wconv, bconv,
            w_delta, bdt, wx_bc, negA_T, dparam, wout, bout)


# -------------------------------------------------------------------------
# Per-call wrapper: only the x layout transform + pallas_call.
# -------------------------------------------------------------------------
@jax.jit
def residual_block_forward(x, prep):
    b, l, d = x.shape
    x_rows = jnp.transpose(x, (1, 0, 2)).reshape(l * b, d)      # seq-major rows
    args = (x_rows,) + tuple(prep)

    def full_spec(a):
        nd = a.ndim
        return pl.BlockSpec(a.shape, lambda i, _nd=nd: (0,) * _nd)

    out_rows = pl.pallas_call(
        residual_block_kernel,
        out_shape=jax.ShapeDtypeStruct((l * b, d), x.dtype),
        grid_spec=pltpu.PrefetchScalarGridSpec(
            num_scalar_prefetch=0,
            grid=(1,),                                          # single grid step, 1 TC
            in_specs=[full_spec(a) for a in args],
            out_specs=pl.BlockSpec((l * b, d), lambda i: (0, 0)),
            scratch_shapes=[
                pltpu.VMEM((PAD + l * b, D_INNER), jnp.float32),      # padded conv input
                pltpu.VMEM((D_STATE, l * b, D_INNER), jnp.float32),   # dA
                pltpu.VMEM((D_STATE, l * b, D_INNER), jnp.float32),   # dBu
                pltpu.VMEM((D_STATE, l * b, D_INNER), jnp.float32),   # states
            ],
        ),
        compiler_params=pltpu.CompilerParams(
            dimension_semantics=("arbitrary",)),
    )(*args)
    return out_rows.reshape(l, b, d).transpose(1, 0, 2)


# -------------------------------------------------------------------------
# Pure-JAX reference (same math, original unfused params) for correctness.
# -------------------------------------------------------------------------
def reference_forward(x, params):
    (nw, win, bin_, wconv, bconv, wx, wdt, bdt, alogT, dparam, wout, bout) = params
    b, l, d = x.shape
    ms = jnp.mean(x * x, axis=-1, keepdims=True)
    xn = x * lax.rsqrt(ms + EPS) * nw
    xr = jnp.einsum("bld,de->ble", xn, win) + bin_
    xi, res = xr[..., :D_INNER], xr[..., D_INNER:]
    xp = jnp.pad(xi, ((0, 0), (D_CONV - 1, 0), (0, 0)))
    conv = sum(xp[:, k:k + l, :] * wconv[k] for k in range(D_CONV)) + bconv
    x_act = conv * jax.nn.sigmoid(conv)
    x_dbl = jnp.einsum("bld,de->ble", x_act, wx)
    delta_r = x_dbl[..., :DT_RANK]
    Bm = x_dbl[..., DT_RANK:DT_RANK + D_STATE]
    Cm = x_dbl[..., DT_RANK + D_STATE:]
    delta = _softplus(jnp.einsum("blr,rd->bld", delta_r, wdt) + bdt)
    A = -jnp.exp(alogT.T)                                       # (D_INNER, N)
    deltaA = jnp.exp(jnp.einsum("bld,dn->bldn", delta, A))
    dBu = jnp.einsum("bld,bln,bld->bldn", delta, Bm, x_act)
    state = jnp.zeros((b, D_INNER, D_STATE), dtype=jnp.float32)
    ys = []
    for i in range(l):
        state = deltaA[:, i] * state + dBu[:, i]
        ys.append(jnp.einsum("bdn,bn->bd", state, Cm[:, i]))
    y = jnp.stack(ys, axis=1) + x_act * dparam
    y = y * (res * jax.nn.sigmoid(res))
    return jnp.einsum("bld,de->ble", y, wout) + bout + x


# -------------------------------------------------------------------------
# Deterministic parameter init (shapes from the module's __init__)
# -------------------------------------------------------------------------
def init_params(key):
    ks = jax.random.split(key, 8)
    scale = 0.1
    nw     = jnp.ones((1, D_MODEL), DTYPE)                                         # RMSNorm.weight
    win    = scale * jax.random.normal(ks[0], (D_MODEL, 2 * D_INNER), DTYPE)       # in_proj.weight^T
    bin_   = scale * jax.random.normal(ks[1], (1, 2 * D_INNER), DTYPE)             # in_proj.bias
    wconv  = scale * jax.random.normal(ks[2], (D_CONV, D_INNER), DTYPE)            # conv1d.weight (tap-major)
    bconv  = scale * jax.random.normal(ks[3], (1, D_INNER), DTYPE)                 # conv1d.bias
    wx     = scale * jax.random.normal(ks[4], (D_INNER, DT_RANK + 2 * D_STATE), DTYPE)
    wdt    = scale * jax.random.normal(ks[5], (DT_RANK, D_INNER), DTYPE)
    bdt    = scale * jax.random.normal(ks[6], (1, D_INNER), DTYPE)
    alogT  = jnp.tile(
        jnp.log(jnp.arange(1, D_STATE + 1, dtype=DTYPE))[:, None], (1, D_INNER)
    )                                                                              # A_log^T
    dparam = jnp.ones((1, D_INNER), DTYPE)                                         # D
    wout   = scale * jax.random.normal(ks[7], (D_INNER, D_MODEL), DTYPE)           # out_proj.weight^T
    bout   = scale * jax.random.normal(jax.random.fold_in(key, 99), (1, D_MODEL), DTYPE)
    return (nw, win, bin_, wconv, bconv, wx, wdt, bdt, alogT, dparam, wout, bout)


if __name__ == "__main__":
    key = jax.random.PRNGKey(0)
    kx, kp = jax.random.split(key)
    x = jax.random.normal(kx, (BATCH, SEQ, D_MODEL), DTYPE)
    params = init_params(kp)
    prep = prepare_params(params)                    # one-time param-only transforms

    out = jax.block_until_ready(residual_block_forward(x, prep))
    ref = jax.block_until_ready(reference_forward(x, params))

    assert out.shape == (BATCH, SEQ, D_MODEL)
    assert jnp.allclose(out, ref, rtol=1e-2, atol=1e-2), (
        f"max abs diff {jnp.max(jnp.abs(out - ref))}"
    )
    print("KERNEL_OK")
</pallas_src>

<mosaic_0001>
module attributes {stable_mosaic.version = 11 : i64} {
  func.func @residual_block_kernel(%arg0: i32, %arg1: memref<16x16xf32, #tpu.memory_space<vmem>>, %arg2: memref<1x16xf32, #tpu.memory_space<vmem>>, %arg3: memref<16x32xf32, #tpu.memory_space<vmem>>, %arg4: memref<1x32xf32, #tpu.memory_space<vmem>>, %arg5: memref<16x32xf32, #tpu.memory_space<vmem>>, %arg6: memref<1x32xf32, #tpu.memory_space<vmem>>, %arg7: memref<4x32xf32, #tpu.memory_space<vmem>>, %arg8: memref<1x32xf32, #tpu.memory_space<vmem>>, %arg9: memref<32x32xf32, #tpu.memory_space<vmem>>, %arg10: memref<1x32xf32, #tpu.memory_space<vmem>>, %arg11: memref<32x8xf32, #tpu.memory_space<vmem>>, %arg12: memref<4x32xf32, #tpu.memory_space<vmem>>, %arg13: memref<1x32xf32, #tpu.memory_space<vmem>>, %arg14: memref<32x16xf32, #tpu.memory_space<vmem>>, %arg15: memref<1x16xf32, #tpu.memory_space<vmem>>, %arg16: memref<16x16xf32, #tpu.memory_space<vmem>>, %arg17: memref<22x32xf32, #tpu.memory_space<vmem>>, %arg18: memref<4x16x32xf32, #tpu.memory_space<vmem>>, %arg19: memref<4x16x32xf32, #tpu.memory_space<vmem>>, %arg20: memref<4x16x32xf32, #tpu.memory_space<vmem>>) attributes {dimension_semantics = [#tpu.dimension_semantics<arbitrary>], iteration_bounds = array<i64: 1>, scalar_prefetch = 0 : i64, scratch_operands = 4 : i64, tpu.core_type = #tpu.core_type<tc>, window_params = [{pipeline_mode = #tpu.pipeline_mode<synchronous>, transform_indices = @transform_0, window_bounds = array<i64: 16, 16>}, {pipeline_mode = #tpu.pipeline_mode<synchronous>, transform_indices = @transform_1, window_bounds = array<i64: 1, 16>}, {pipeline_mode = #tpu.pipeline_mode<synchronous>, transform_indices = @transform_2, window_bounds = array<i64: 16, 32>}, {pipeline_mode = #tpu.pipeline_mode<synchronous>, transform_indices = @transform_3, window_bounds = array<i64: 1, 32>}, {pipeline_mode = #tpu.pipeline_mode<synchronous>, transform_indices = @transform_4, window_bounds = array<i64: 16, 32>}, {pipeline_mode = #tpu.pipeline_mode<synchronous>, transform_indices = @transform_5, window_bounds = array<i64: 1, 32>}, {pipeline_mode = #tpu.pipeline_mode<synchronous>, transform_indices = @transform_6, window_bounds = array<i64: 4, 32>}, {pipeline_mode = #tpu.pipeline_mode<synchronous>, transform_indices = @transform_7, window_bounds = array<i64: 1, 32>}, {pipeline_mode = #tpu.pipeline_mode<synchronous>, transform_indices = @transform_8, window_bounds = array<i64: 32, 32>}, {pipeline_mode = #tpu.pipeline_mode<synchronous>, transform_indices = @transform_9, window_bounds = array<i64: 1, 32>}, {pipeline_mode = #tpu.pipeline_mode<synchronous>, transform_indices = @transform_10, window_bounds = array<i64: 32, 8>}, {pipeline_mode = #tpu.pipeline_mode<synchronous>, transform_indices = @transform_11, window_bounds = array<i64: 4, 32>}, {pipeline_mode = #tpu.pipeline_mode<synchronous>, transform_indices = @transform_12, window_bounds = array<i64: 1, 32>}, {pipeline_mode = #tpu.pipeline_mode<synchronous>, transform_indices = @transform_13, window_bounds = array<i64: 32, 16>}, {pipeline_mode = #tpu.pipeline_mode<synchronous>, transform_indices = @transform_14, window_bounds = array<i64: 1, 16>}, {pipeline_mode = #tpu.pipeline_mode<synchronous>, transform_indices = @transform_15, window_bounds = array<i64: 16, 16>}]} {
    %c0 = arith.constant 0 : index
    %c0_0 = arith.constant 0 : index
    %0 = vector.load %arg1[%c0, %c0_0] : memref<16x16xf32, #tpu.memory_space<vmem>>, vector<16x16xf32>
    %1 = arith.mulf %0, %0 : vector<16x16xf32>
    %cst = arith.constant dense<0.000000e+00> : vector<16xf32>
    %2 = vector.multi_reduction <add>, %1, %cst [1] : vector<16x16xf32> to vector<16xf32>
    %3 = vector.shape_cast %2 : vector<16xf32> to vector<16x1xf32>
    %cst_1 = arith.constant 1.600000e+01 : f32
    %4 = vector.broadcast %cst_1 : f32 to vector<16x1xf32>
    %5 = arith.divf %3, %4 : vector<16x1xf32>
    %cst_2 = arith.constant 9.99999974E-6 : f32
    %6 = vector.broadcast %cst_2 : f32 to vector<16x1xf32>
    %7 = arith.addf %5, %6 : vector<16x1xf32>
    %8 = math.rsqrt %7 : vector<16x1xf32>
    %9 = vector.broadcast %8 : vector<16x1xf32> to vector<16x16xf32>
    %10 = arith.mulf %0, %9 : vector<16x16xf32>
    %c0_3 = arith.constant 0 : index
    %c0_4 = arith.constant 0 : index
    %11 = vector.load %arg2[%c0_3, %c0_4] : memref<1x16xf32, #tpu.memory_space<vmem>>, vector<1x16xf32>
    %12 = vector.broadcast %11 : vector<1x16xf32> to vector<16x16xf32>
    %13 = arith.mulf %10, %12 : vector<16x16xf32>
    %c0_5 = arith.constant 0 : index
    %c0_6 = arith.constant 0 : index
    %14 = vector.load %arg3[%c0_5, %c0_6] : memref<16x32xf32, #tpu.memory_space<vmem>>, vector<16x32xf32>
    %cst_7 = arith.constant dense<0.000000e+00> : vector<16x32xf32>
    %15 = tpu.matmul %13, %14, %cst_7 {dimension_numbers = #tpu.dot_dimension_numbers<[1], [0], [0], [1], [0, 0, 1, 1], [], []>} : vector<16x16xf32>, vector<16x32xf32>, vector<16x32xf32> -> vector<16x32xf32>
    %c0_8 = arith.constant 0 : index
    %c0_9 = arith.constant 0 : index
    %16 = vector.load %arg4[%c0_8, %c0_9] : memref<1x32xf32, #tpu.memory_space<vmem>>, vector<1x32xf32>
    %17 = vector.broadcast %16 : vector<1x32xf32> to vector<16x32xf32>
    %18 = arith.addf %15, %17 : vector<16x32xf32>
    %c0_10 = arith.constant 0 : index
    %c0_11 = arith.constant 0 : index
    %19 = vector.load %arg5[%c0_10, %c0_11] : memref<16x32xf32, #tpu.memory_space<vmem>>, vector<16x32xf32>
    %cst_12 = arith.constant dense<0.000000e+00> : vector<16x32xf32>
    %20 = tpu.matmul %13, %19, %cst_12 {dimension_numbers = #tpu.dot_dimension_numbers<[1], [0], [0], [1], [0, 0, 1, 1], [], []>} : vector<16x16xf32>, vector<16x32xf32>, vector<16x32xf32> -> vector<16x32xf32>
    %c0_13 = arith.constant 0 : index
    %c0_14 = arith.constant 0 : index
    %21 = vector.load %arg6[%c0_13, %c0_14] : memref<1x32xf32, #tpu.memory_space<vmem>>, vector<1x32xf32>
    %22 = vector.broadcast %21 : vector<1x32xf32> to vector<16x32xf32>
    %23 = arith.addf %20, %22 : vector<16x32xf32>
    %cst_15 = arith.constant 0.000000e+00 : f32
    %24 = vector.broadcast %cst_15 : f32 to vector<6x32xf32>
    %c0_16 = arith.constant 0 : index
    %c0_17 = arith.constant 0 : index
    %25 = vector.load %arg17[%c0_16, %c0_17] : memref<22x32xf32, #tpu.memory_space<vmem>>, vector<6x32xf32>
    tpu.vector_store %arg17[%c0_16, %c0_17], %24 {strides = array<i32>} : memref<22x32xf32, #tpu.memory_space<vmem>>, vector<6x32xf32>,
    %c6 = arith.constant 6 : index
    %c0_18 = arith.constant 0 : index
    %26 = vector.load %arg17[%c6, %c0_18] : memref<22x32xf32, #tpu.memory_space<vmem>>, vector<16x32xf32>
    tpu.vector_store %arg17[%c6, %c0_18], %18 {strides = array<i32>} : memref<22x32xf32, #tpu.memory_space<vmem>>, vector<16x32xf32>,
    %c0_19 = arith.constant 0 : index
    %c0_20 = arith.constant 0 : index
    %27 = vector.load %arg8[%c0_19, %c0_20] : memref<1x32xf32, #tpu.memory_space<vmem>>, vector<1x32xf32>
    %c0_21 = arith.constant 0 : index
    %c0_22 = arith.constant 0 : index
    %28 = vector.load %arg17[%c0_21, %c0_22] : memref<22x32xf32, #tpu.memory_space<vmem>>, vector<16x32xf32>
    %c0_23 = arith.constant 0 : index
    %c0_24 = arith.constant 0 : index
    %29 = vector.load %arg7[%c0_23, %c0_24] : memref<4x32xf32, #tpu.memory_space<vmem>>, vector<1x32xf32>
    %30 = vector.broadcast %29 : vector<1x32xf32> to vector<16x32xf32>
    %31 = arith.mulf %28, %30 : vector<16x32xf32>
    %32 = vector.broadcast %27 : vector<1x32xf32> to vector<16x32xf32>
    %33 = arith.addf %32, %31 : vector<16x32xf32>
    %c2 = arith.constant 2 : index
    %c0_25 = arith.constant 0 : index
    %34 = vector.load %arg17[%c2, %c0_25] : memref<22x32xf32, #tpu.memory_space<vmem>>, vector<16x32xf32>
    %c1 = arith.constant 1 : index
    %c0_26 = arith.constant 0 : index
    %35 = vector.load %arg7[%c1, %c0_26] : memref<4x32xf32, #tpu.memory_space<vmem>>, vector<1x32xf32>
    %36 = vector.broadcast %35 : vector<1x32xf32> to vector<16x32xf32>
    %37 = arith.mulf %34, %36 : vector<16x32xf32>
    %38 = arith.addf %33, %37 : vector<16x32xf32>
    %c4 = arith.constant 4 : index
    %c0_27 = arith.constant 0 : index
    %39 = vector.load %arg17[%c4, %c0_27] : memref<22x32xf32, #tpu.memory_space<vmem>>, vector<16x32xf32>
    %c2_28 = arith.constant 2 : index
    %c0_29 = arith.constant 0 : index
    %40 = vector.load %arg7[%c2_28, %c0_29] : memref<4x32xf32, #tpu.memory_space<vmem>>, vector<1x32xf32>
    %41 = vector.broadcast %40 : vector<1x32xf32> to vector<16x32xf32>
    %42 = arith.mulf %39, %41 : vector<16x32xf32>
    %43 = arith.addf %38, %42 : vector<16x32xf32>
    %c6_30 = arith.constant 6 : index
    %c0_31 = arith.constant 0 : index
    %44 = vector.load %arg17[%c6_30, %c0_31] : memref<22x32xf32, #tpu.memory_space<vmem>>, vector<16x32xf32>
    %c3 = arith.constant 3 : index
    %c0_32 = arith.constant 0 : index
    %45 = vector.load %arg7[%c3, %c0_32] : memref<4x32xf32, #tpu.memory_space<vmem>>, vector<1x32xf32>
    %46 = vector.broadcast %45 : vector<1x32xf32> to vector<16x32xf32>
    %47 = arith.mulf %44, %46 : vector<16x32xf32>
    %48 = arith.addf %43, %47 : vector<16x32xf32>
    %cst_33 = arith.constant 0.000000e+00 : f32
    %49 = vector.broadcast %cst_33 : f32 to vector<16x32xf32>
    %50 = arith.subf %49, %48 : vector<16x32xf32>
    %51 = math.exp %50 : vector<16x32xf32>
    %cst_34 = arith.constant 1.000000e+00 : f32
    %52 = vector.broadcast %cst_34 : f32 to vector<16x32xf32>
    %53 = arith.addf %52, %51 : vector<16x32xf32>
    %54 = tpu.reciprocal %53 {approx = true} : vector<16x32xf32> -> vector<16x32xf32>
    %55 = arith.mulf %48, %54 : vector<16x32xf32>
    %c0_35 = arith.constant 0 : index
    %c0_36 = arith.constant 0 : index
    %56 = vector.load %arg9[%c0_35, %c0_36] : memref<32x32xf32, #tpu.memory_space<vmem>>, vector<32x32xf32>
    %cst_37 = arith.constant dense<0.000000e+00> : vector<16x32xf32>
    %57 = tpu.matmul %55, %56, %cst_37 {dimension_numbers = #tpu.dot_dimension_numbers<[1], [0], [0], [1], [0, 0, 1, 1], [], []>} : vector<16x32xf32>, vector<32x32xf32>, vector<16x32xf32> -> vector<16x32xf32>
    %c0_38 = arith.constant 0 : index
    %c0_39 = arith.constant 0 : index
    %58 = vector.load %arg10[%c0_38, %c0_39] : memref<1x32xf32, #tpu.memory_space<vmem>>, vector<1x32xf32>
    %59 = vector.broadcast %58 : vector<1x32xf32> to vector<16x32xf32>
    %60 = arith.addf %57, %59 : vector<16x32xf32>
    %cst_40 = arith.constant 2.000000e+01 : f32
    %61 = vector.broadcast %cst_40 : f32 to vector<16x32xf32>
    %62 = arith.cmpf ogt, %60, %61 : vector<16x32xf32>
    %cst_41 = arith.constant 2.000000e+01 : f32
    %63 = vector.broadcast %cst_41 : f32 to vector<16x32xf32>
    %64 = arith.minimumf %60, %63 : vector<16x32xf32>
    %65 = math.exp %64 : vector<16x32xf32>
    %66 = math.log1p %65 : vector<16x32xf32>
    %67 = arith.select %62, %60, %66 : vector<16x32xi1>, vector<16x32xf32>
    %c0_42 = arith.constant 0 : index
    %c0_43 = arith.constant 0 : index
    %68 = vector.load %arg11[%c0_42, %c0_43] : memref<32x8xf32, #tpu.memory_space<vmem>>, vector<32x8xf32>
    %cst_44 = arith.constant dense<0.000000e+00> : vector<16x8xf32>
    %69 = tpu.matmul %55, %68, %cst_44 {dimension_numbers = #tpu.dot_dimension_numbers<[1], [0], [0], [1], [0, 0, 1, 1], [], []>} : vector<16x32xf32>, vector<32x8xf32>, vector<16x8xf32> -> vector<16x8xf32>
    %70 = arith.mulf %67, %55 : vector<16x32xf32>
    %c0_45 = arith.constant 0 : index
    %c0_46 = arith.constant 0 : index
    %71 = vector.load %arg12[%c0_45, %c0_46] : memref<4x32xf32, #tpu.memory_space<vmem>>, vector<1x32xf32>
    %72 = vector.broadcast %71 : vector<1x32xf32> to vector<16x32xf32>
    %73 = arith.mulf %67, %72 : vector<16x32xf32>
    %74 = math.exp %73 : vector<16x32xf32>
    %c0_47 = arith.constant 0 : index
    %c0_48 = arith.constant 0 : index
    %c0_49 = arith.constant 0 : index
    %75 = vector.load %arg18[%c0_47, %c0_48, %c0_49] : memref<4x16x32xf32, #tpu.memory_space<vmem>>, vector<1x16x32xf32>
    %76 = vector.shape_cast %75 : vector<1x16x32xf32> to vector<16x32xf32>
    %77 = vector.shape_cast %74 : vector<16x32xf32> to vector<1x16x32xf32>
    tpu.vector_store %arg18[%c0_47, %c0_48, %c0_49], %77 {strides = array<i32>} : memref<4x16x32xf32, #tpu.memory_space<vmem>>, vector<1x16x32xf32>,
    %78 = vector.extract_strided_slice %69 {offsets = [0, 0], sizes = [16, 1], strides = [1, 1]} : vector<16x8xf32> to vector<16x1xf32>
    %79 = vector.broadcast %78 : vector<16x1xf32> to vector<16x32xf32>
    %80 = arith.mulf %70, %79 : vector<16x32xf32>
    %c0_50 = arith.constant 0 : index
    %c0_51 = arith.constant 0 : index
    %c0_52 = arith.constant 0 : index
    %81 = vector.load %arg19[%c0_50, %c0_51, %c0_52] : memref<4x16x32xf32, #tpu.memory_space<vmem>>, vector<1x16x32xf32>
    %82 = vector.shape_cast %81 : vector<1x16x32xf32> to vector<16x32xf32>
    %83 = vector.shape_cast %80 : vector<16x32xf32> to vector<1x16x32xf32>
    tpu.vector_store %arg19[%c0_50, %c0_51, %c0_52], %83 {strides = array<i32>} : memref<4x16x32xf32, #tpu.memory_space<vmem>>, vector<1x16x32xf32>,
    %c1_53 = arith.constant 1 : index
    %c0_54 = arith.constant 0 : index
    %84 = vector.load %arg12[%c1_53, %c0_54] : memref<4x32xf32, #tpu.memory_space<vmem>>, vector<1x32xf32>
    %85 = vector.broadcast %84 : vector<1x32xf32> to vector<16x32xf32>
    %86 = arith.mulf %67, %85 : vector<16x32xf32>
    %87 = math.exp %86 : vector<16x32xf32>
    %c1_55 = arith.constant 1 : index
    %c0_56 = arith.constant 0 : index
    %c0_57 = arith.constant 0 : index
    %88 = vector.load %arg18[%c1_55, %c0_56, %c0_57] : memref<4x16x32xf32, #tpu.memory_space<vmem>>, vector<1x16x32xf32>
    %89 = vector.shape_cast %88 : vector<1x16x32xf32> to vector<16x32xf32>
    %90 = vector.shape_cast %87 : vector<16x32xf32> to vector<1x16x32xf32>
    tpu.vector_store %arg18[%c1_55, %c0_56, %c0_57], %90 {strides = array<i32>} : memref<4x16x32xf32, #tpu.memory_space<vmem>>, vector<1x16x32xf32>,
    %91 = vector.extract_strided_slice %69 {offsets = [0, 1], sizes = [16, 1], strides = [1, 1]} : vector<16x8xf32> to vector<16x1xf32>
    %92 = vector.broadcast %91 : vector<16x1xf32> to vector<16x32xf32>
    %93 = arith.mulf %70, %92 : vector<16x32xf32>
    %c1_58 = arith.constant 1 : index
    %c0_59 = arith.constant 0 : index
    %c0_60 = arith.constant 0 : index
    %94 = vector.load %arg19[%c1_58, %c0_59, %c0_60] : memref<4x16x32xf32, #tpu.memory_space<vmem>>, vector<1x16x32xf32>
    %95 = vector.shape_cast %94 : vector<1x16x32xf32> to vector<16x32xf32>
    %96 = vector.shape_cast %93 : vector<16x32xf32> to vector<1x16x32xf32>
    tpu.vector_store %arg19[%c1_58, %c0_59, %c0_60], %96 {strides = array<i32>} : memref<4x16x32xf32, #tpu.memory_space<vmem>>, vector<1x16x32xf32>,
    %c2_61 = arith.constant 2 : index
    %c0_62 = arith.constant 0 : index
    %97 = vector.load %arg12[%c2_61, %c0_62] : memref<4x32xf32, #tpu.memory_space<vmem>>, vector<1x32xf32>
    %98 = vector.broadcast %97 : vector<1x32xf32> to vector<16x32xf32>
    %99 = arith.mulf %67, %98 : vector<16x32xf32>
    %100 = math.exp %99 : vector<16x32xf32>
    %c2_63 = arith.constant 2 : index
    %c0_64 = arith.constant 0 : index
    %c0_65 = arith.constant 0 : index
    %101 = vector.load %arg18[%c2_63, %c0_64, %c0_65] : memref<4x16x32xf32, #tpu.memory_space<vmem>>, vector<1x16x32xf32>
    %102 = vector.shape_cast %101 : vector<1x16x32xf32> to vector<16x32xf32>
    %103 = vector.shape_cast %100 : vector<16x32xf32> to vector<1x16x32xf32>
    tpu.vector_store %arg18[%c2_63, %c0_64, %c0_65], %103 {strides = array<i32>} : memref<4x16x32xf32, #tpu.memory_space<vmem>>, vector<1x16x32xf32>,
    %104 = vector.extract_strided_slice %69 {offsets = [0, 2], sizes = [16, 1], strides = [1, 1]} : vector<16x8xf32> to vector<16x1xf32>
    %105 = vector.broadcast %104 : vector<16x1xf32> to vector<16x32xf32>
    %106 = arith.mulf %70, %105 : vector<16x32xf32>
    %c2_66 = arith.constant 2 : index
    %c0_67 = arith.constant 0 : index
    %c0_68 = arith.constant 0 : index
    %107 = vector.load %arg19[%c2_66, %c0_67, %c0_68] : memref<4x16x32xf32, #tpu.memory_space<vmem>>, vector<1x16x32xf32>
    %108 = vector.shape_cast %107 : vector<1x16x32xf32> to vector<16x32xf32>
    %109 = vector.shape_cast %106 : vector<16x32xf32> to vector<1x16x32xf32>
    tpu.vector_store %arg19[%c2_66, %c0_67, %c0_68], %109 {strides = array<i32>} : memref<4x16x32xf32, #tpu.memory_space<vmem>>, vector<1x16x32xf32>,
    %c3_69 = arith.constant 3 : index
    %c0_70 = arith.constant 0 : index
    %110 = vector.load %arg12[%c3_69, %c0_70] : memref<4x32xf32, #tpu.memory_space<vmem>>, vector<1x32xf32>
    %111 = vector.broadcast %110 : vector<1x32xf32> to vector<16x32xf32>
    %112 = arith.mulf %67, %111 : vector<16x32xf32>
    %113 = math.exp %112 : vector<16x32xf32>
    %c3_71 = arith.constant 3 : index
    %c0_72 = arith.constant 0 : index
    %c0_73 = arith.constant 0 : index
    %114 = vector.load %arg18[%c3_71, %c0_72, %c0_73] : memref<4x16x32xf32, #tpu.memory_space<vmem>>, vector<1x16x32xf32>
    %115 = vector.shape_cast %114 : vector<1x16x32xf32> to vector<16x32xf32>
    %116 = vector.shape_cast %113 : vector<16x32xf32> to vector<1x16x32xf32>
    tpu.vector_store %arg18[%c3_71, %c0_72, %c0_73], %116 {strides = array<i32>} : memref<4x16x32xf32, #tpu.memory_space<vmem>>, vector<1x16x32xf32>,
    %117 = vector.extract_strided_slice %69 {offsets = [0, 3], sizes = [16, 1], strides = [1, 1]} : vector<16x8xf32> to vector<16x1xf32>
    %118 = vector.broadcast %117 : vector<16x1xf32> to vector<16x32xf32>
    %119 = arith.mulf %70, %118 : vector<16x32xf32>
    %c3_74 = arith.constant 3 : index
    %c0_75 = arith.constant 0 : index
    %c0_76 = arith.constant 0 : index
    %120 = vector.load %arg19[%c3_74, %c0_75, %c0_76] : memref<4x16x32xf32, #tpu.memory_space<vmem>>, vector<1x16x32xf32>
    %121 = vector.shape_cast %120 : vector<1x16x32xf32> to vector<16x32xf32>
    %122 = vector.shape_cast %119 : vector<16x32xf32> to vector<1x16x32xf32>
    tpu.vector_store %arg19[%c3_74, %c0_75, %c0_76], %122 {strides = array<i32>} : memref<4x16x32xf32, #tpu.memory_space<vmem>>, vector<1x16x32xf32>,
    %cst_77 = arith.constant 0.000000e+00 : f32
    %123 = vector.broadcast %cst_77 : f32 to vector<2x32xf32>
    %cst_78 = arith.constant 0.000000e+00 : f32
    %124 = vector.broadcast %cst_78 : f32 to vector<2x32xf32>
    %cst_79 = arith.constant 0.000000e+00 : f32
    %125 = vector.broadcast %cst_79 : f32 to vector<2x32xf32>
    %cst_80 = arith.constant 0.000000e+00 : f32
    %126 = vector.broadcast %cst_80 : f32 to vector<2x32xf32>
    %c0_81 = arith.constant 0 : index
    %c0_82 = arith.constant 0 : index
    %c0_83 = arith.constant 0 : index
    %127 = vector.load %arg18[%c0_81, %c0_82, %c0_83] : memref<4x16x32xf32, #tpu.memory_space<vmem>>, vector<1x2x32xf32>
    %128 = vector.shape_cast %127 : vector<1x2x32xf32> to vector<2x32xf32>
    %129 = arith.mulf %128, %123 : vector<2x32xf32>
    %c0_84 = arith.constant 0 : index
    %c0_85 = arith.constant 0 : index
    %c0_86 = arith.constant 0 : index
    %130 = vector.load %arg19[%c0_84, %c0_85, %c0_86] : memref<4x16x32xf32, #tpu.memory_space<vmem>>, vector<1x2x32xf32>
    %131 = vector.shape_cast %130 : vector<1x2x32xf32> to vector<2x32xf32>
    %132 = arith.addf %129, %131 : vector<2x32xf32>
    %c0_87 = arith.constant 0 : index
    %c0_88 = arith.constant 0 : index
    %c0_89 = arith.constant 0 : index
    %133 = vector.load %arg20[%c0_87, %c0_88, %c0_89] : memref<4x16x32xf32, #tpu.memory_space<vmem>>, vector<1x2x32xf32>
    %134 = vector.shape_cast %133 : vector<1x2x32xf32> to vector<2x32xf32>
    %135 = vector.shape_cast %132 : vector<2x32xf32> to vector<1x2x32xf32>
    tpu.vector_store %arg20[%c0_87, %c0_88, %c0_89], %135 {strides = array<i32>} : memref<4x16x32xf32, #tpu.memory_space<vmem>>, vector<1x2x32xf32>,
    %c1_90 = arith.constant 1 : index
    %c0_91 = arith.constant 0 : index
    %c0_92 = arith.constant 0 : index
    %136 = vector.load %arg18[%c1_90, %c0_91, %c0_92] : memref<4x16x32xf32, #tpu.memory_space<vmem>>, vector<1x2x32xf32>
    %137 = vector.shape_cast %136 : vector<1x2x32xf32> to vector<2x32xf32>
    %138 = arith.mulf %137, %124 : vector<2x32xf32>
    %c1_93 = arith.constant 1 : index
    %c0_94 = arith.constant 0 : index
    %c0_95 = arith.constant 0 : index
    %139 = vector.load %arg19[%c1_93, %c0_94, %c0_95] : memref<4x16x32xf32, #tpu.memory_space<vmem>>, vector<1x2x32xf32>
    %140 = vector.shape_cast %139 : vector<1x2x32xf32> to vector<2x32xf32>
    %141 = arith.addf %138, %140 : vector<2x32xf32>
    %c1_96 = arith.constant 1 : index
    %c0_97 = arith.constant 0 : index
    %c0_98 = arith.constant 0 : index
    %142 = vector.load %arg20[%c1_96, %c0_97, %c0_98] : memref<4x16x32xf32, #tpu.memory_space<vmem>>, vector<1x2x32xf32>
    %143 = vector.shape_cast %142 : vector<1x2x32xf32> to vector<2x32xf32>
    %144 = vector.shape_cast %141 : vector<2x32xf32> to vector<1x2x32xf32>
    tpu.vector_store %arg20[%c1_96, %c0_97, %c0_98], %144 {strides = array<i32>} : memref<4x16x32xf32, #tpu.memory_space<vmem>>, vector<1x2x32xf32>,
    %c2_99 = arith.constant 2 : index
    %c0_100 = arith.constant 0 : index
    %c0_101 = arith.constant 0 : index
    %145 = vector.load %arg18[%c2_99, %c0_100, %c0_101] : memref<4x16x32xf32, #tpu.memory_space<vmem>>, vector<1x2x32xf32>
    %146 = vector.shape_cast %145 : vector<1x2x32xf32> to vector<2x32xf32>
    %147 = arith.mulf %146, %125 : vector<2x32xf32>
    %c2_102 = arith.constant 2 : index
    %c0_103 = arith.constant 0 : index
    %c0_104 = arith.constant 0 : index
    %148 = vector.load %arg19[%c2_102, %c0_103, %c0_104] : memref<4x16x32xf32, #tpu.memory_space<vmem>>, vector<1x2x32xf32>
    %149 = vector.shape_cast %148 : vector<1x2x32xf32> to vector<2x32xf32>
    %150 = arith.addf %147, %149 : vector<2x32xf32>
    %c2_105 = arith.constant 2 : index
    %c0_106 = arith.constant 0 : index
    %c0_107 = arith.constant 0 : index
    %151 = vector.load %arg20[%c2_105, %c0_106, %c0_107] : memref<4x16x32xf32, #tpu.memory_space<vmem>>, vector<1x2x32xf32>
    %152 = vector.shape_cast %151 : vector<1x2x32xf32> to vector<2x32xf32>
    %153 = vector.shape_cast %150 : vector<2x32xf32> to vector<1x2x32xf32>
    tpu.vector_store %arg20[%c2_105, %c0_106, %c0_107], %153 {strides = array<i32>} : memref<4x16x32xf32, #tpu.memory_space<vmem>>, vector<1x2x32xf32>,
    %c3_108 = arith.constant 3 : index
    %c0_109 = arith.constant 0 : index
    %c0_110 = arith.constant 0 : index
    %154 = vector.load %arg18[%c3_108, %c0_109, %c0_110] : memref<4x16x32xf32, #tpu.memory_space<vmem>>, vector<1x2x32xf32>
    %155 = vector.shape_cast %154 : vector<1x2x32xf32> to vector<2x32xf32>
    %156 = arith.mulf %155, %126 : vector<2x32xf32>
    %c3_111 = arith.constant 3 : index
    %c0_112 = arith.constant 0 : index
    %c0_113 = arith.constant 0 : index
    %157 = vector.load %arg19[%c3_111, %c0_112, %c0_113] : memref<4x16x32xf32, #tpu.memory_space<vmem>>, vector<1x2x32xf32>
    %158 = vector.shape_cast %157 : vector<1x2x32xf32> to vector<2x32xf32>
    %159 = arith.addf %156, %158 : vector<2x32xf32>
    %c3_114 = arith.constant 3 : index
    %c0_115 = arith.constant 0 : index
    %c0_116 = arith.constant 0 : index
    %160 = vector.load %arg20[%c3_114, %c0_115, %c0_116] : memref<4x16x32xf32, #tpu.memory_space<vmem>>, vector<1x2x32xf32>
    %161 = vector.shape_cast %160 : vector<1x2x32xf32> to vector<2x32xf32>
    %162 = vector.shape_cast %159 : vector<2x32xf32> to vector<1x2x32xf32>
    tpu.vector_store %arg20[%c3_114, %c0_115, %c0_116], %162 {strides = array<i32>} : memref<4x16x32xf32, #tpu.memory_space<vmem>>, vector<1x2x32xf32>,
    %c0_117 = arith.constant 0 : index
    %c2_118 = arith.constant 2 : index
    %c0_119 = arith.constant 0 : index
    %163 = vector.load %arg18[%c0_117, %c2_118, %c0_119] : memref<4x16x32xf32, #tpu.memory_space<vmem>>, vector<1x2x32xf32>
    %164 = vector.shape_cast %163 : vector<1x2x32xf32> to vector<2x32xf32>
    %165 = arith.mulf %164, %132 : vector<2x32xf32>
    %c0_120 = arith.constant 0 : index
    %c2_121 = arith.constant 2 : index
    %c0_122 = arith.constant 0 : index
    %166 = vector.load %arg19[%c0_120, %c2_121, %c0_122] : memref<4x16x32xf32, #tpu.memory_space<vmem>>, vector<1x2x32xf32>
    %167 = vector.shape_cast %166 : vector<1x2x32xf32> to vector<2x32xf32>
    %168 = arith.addf %165, %167 : vector<2x32xf32>
    %c0_123 = arith.constant 0 : index
    %c2_124 = arith.constant 2 : index
    %c0_125 = arith.constant 0 : index
    %169 = vector.load %arg20[%c0_123, %c2_124, %c0_125] : memref<4x16x32xf32, #tpu.memory_space<vmem>>, vector<1x2x32xf32>
    %170 = vector.shape_cast %169 : vector<1x2x32xf32> to vector<2x32xf32>
    %171 = vector.shape_cast %168 : vector<2x32xf32> to vector<1x2x32xf32>
    tpu.vector_store %arg20[%c0_123, %c2_124, %c0_125], %171 {strides = array<i32>} : memref<4x16x32xf32, #tpu.memory_space<vmem>>, vector<1x2x32xf32>,
    %c1_126 = arith.constant 1 : index
    %c2_127 = arith.constant 2 : index
    %c0_128 = arith.constant 0 : index
    %172 = vector.load %arg18[%c1_126, %c2_127, %c0_128] : memref<4x16x32xf32, #tpu.memory_space<vmem>>, vector<1x2x32xf32>
    %173 = vector.shape_cast %172 : vector<1x2x32xf32> to vector<2x32xf32>
    %174 = arith.mulf %173, %141 : vector<2x32xf32>
    %c1_129 = arith.constant 1 : index
    %c2_130 = arith.constant 2 : index
    %c0_131 = arith.constant 0 : index
    %175 = vector.load %arg19[%c1_129, %c2_130, %c0_131] : memref<4x16x32xf32, #tpu.memory_space<vmem>>, vector<1x2x32xf32>
    %176 = vector.shape_cast %175 : vector<1x2x32xf32> to vector<2x32xf32>
    %177 = arith.addf %174, %176 : vector<2x32xf32>
    %c1_132 = arith.constant 1 : index
    %c2_133 = arith.constant 2 : index
    %c0_134 = arith.constant 0 : index
    %178 = vector.load %arg20[%c1_132, %c2_133, %c0_134] : memref<4x16x32xf32, #tpu.memory_space<vmem>>, vector<1x2x32xf32>
    %179 = vector.shape_cast %178 : vector<1x2x32xf32> to vector<2x32xf32>
    %180 = vector.shape_cast %177 : vector<2x32xf32> to vector<1x2x32xf32>
    tpu.vector_store %arg20[%c1_132, %c2_133, %c0_134], %180 {strides = array<i32>} : memref<4x16x32xf32, #tpu.memory_space<vmem>>, vector<1x2x32xf32>,
    %c2_135 = arith.constant 2 : index
    %c2_136 = arith.constant 2 : index
    %c0_137 = arith.constant 0 : index
    %181 = vector.load %arg18[%c2_135, %c2_136, %c0_137] : memref<4x16x32xf32, #tpu.memory_space<vmem>>, vector<1x2x32xf32>
    %182 = vector.shape_cast %181 : vector<1x2x32xf32> to vector<2x32xf32>
    %183 = arith.mulf %182, %150 : vector<2x32xf32>
    %c2_138 = arith.constant 2 : index
    %c2_139 = arith.constant 2 : index
    %c0_140 = arith.constant 0 : index
    %184 = vector.load %arg19[%c2_138, %c2_139, %c0_140] : memref<4x16x32xf32, #tpu.memory_space<vmem>>, vector<1x2x32xf32>
    %185 = vector.shape_cast %184 : vector<1x2x32xf32> to vector<2x32xf32>
    %186 = arith.addf %183, %185 : vector<2x32xf32>
    %c2_141 = arith.constant 2 : index
    %c2_142 = arith.constant 2 : index
    %c0_143 = arith.constant 0 : index
    %187 = vector.load %arg20[%c2_141, %c2_142, %c0_143] : memref<4x16x32xf32, #tpu.memory_space<vmem>>, vector<1x2x32xf32>
    %188 = vector.shape_cast %187 : vector<1x2x32xf32> to vector<2x32xf32>
    %189 = vector.shape_cast %186 : vector<2x32xf32> to vector<1x2x32xf32>
    tpu.vector_store %arg20[%c2_141, %c2_142, %c0_143], %189 {strides = array<i32>} : memref<4x16x32xf32, #tpu.memory_space<vmem>>, vector<1x2x32xf32>,
    %c3_144 = arith.constant 3 : index
    %c2_145 = arith.constant 2 : index
    %c0_146 = arith.constant 0 : index
    %190 = vector.load %arg18[%c3_144, %c2_145, %c0_146] : memref<4x16x32xf32, #tpu.memory_space<vmem>>, vector<1x2x32xf32>
    %191 = vector.shape_cast %190 : vector<1x2x32xf32> to vector<2x32xf32>
    %192 = arith.mulf %191, %159 : vector<2x32xf32>
    %c3_147 = arith.constant 3 : index
    %c2_148 = arith.constant 2 : index
    %c0_149 = arith.constant 0 : index
    %193 = vector.load %arg19[%c3_147, %c2_148, %c0_149] : memref<4x16x32xf32, #tpu.memory_space<vmem>>, vector<1x2x32xf32>
    %194 = vector.shape_cast %193 : vector<1x2x32xf32> to vector<2x32xf32>
    %195 = arith.addf %192, %194 : vector<2x32xf32>
    %c3_150 = arith.constant 3 : index
    %c2_151 = arith.constant 2 : index
    %c0_152 = arith.constant 0 : index
    %196 = vector.load %arg20[%c3_150, %c2_151, %c0_152] : memref<4x16x32xf32, #tpu.memory_space<vmem>>, vector<1x2x32xf32>
    %197 = vector.shape_cast %196 : vector<1x2x32xf32> to vector<2x32xf32>
    %198 = vector.shape_cast %195 : vector<2x32xf32> to vector<1x2x32xf32>
    tpu.vector_store %arg20[%c3_150, %c2_151, %c0_152], %198 {strides = array<i32>} : memref<4x16x32xf32, #tpu.memory_space<vmem>>, vector<1x2x32xf32>,
    %c0_153 = arith.constant 0 : index
    %c4_154 = arith.constant 4 : index
    %c0_155 = arith.constant 0 : index
    %199 = vector.load %arg18[%c0_153, %c4_154, %c0_155] : memref<4x16x32xf32, #tpu.memory_space<vmem>>, vector<1x2x32xf32>
    %200 = vector.shape_cast %199 : vector<1x2x32xf32> to vector<2x32xf32>
    %201 = arith.mulf %200, %168 : vector<2x32xf32>
    %c0_156 = arith.constant 0 : index
    %c4_157 = arith.constant 4 : index
    %c0_158 = arith.constant 0 : index
    %202 = vector.load %arg19[%c0_156, %c4_157, %c0_158] : memref<4x16x32xf32, #tpu.memory_space<vmem>>, vector<1x2x32xf32>
    %203 = vector.shape_cast %202 : vector<1x2x32xf32> to vector<2x32xf32>
    %204 = arith.addf %201, %203 : vector<2x32xf32>
    %c0_159 = arith.constant 0 : index
    %c4_160 = arith.constant 4 : index
    %c0_161 = arith.constant 0 : index
    %205 = vector.load %arg20[%c0_159, %c4_160, %c0_161] : memref<4x16x32xf32, #tpu.memory_space<vmem>>, vector<1x2x32xf32>
    %206 = vector.shape_cast %205 : vector<1x2x32xf32> to vector<2x32xf32>
    %207 = vector.shape_cast %204 : vector<2x32xf32> to vector<1x2x32xf32>
    tpu.vector_store %arg20[%c0_159, %c4_160, %c0_161], %207 {strides = array<i32>} : memref<4x16x32xf32, #tpu.memory_space<vmem>>, vector<1x2x32xf32>,
    %c1_162 = arith.constant 1 : index
    %c4_163 = arith.constant 4 : index
    %c0_164 = arith.constant 0 : index
    %208 = vector.load %arg18[%c1_162, %c4_163, %c0_164] : memref<4x16x32xf32, #tpu.memory_space<vmem>>, vector<1x2x32xf32>
    %209 = vector.shape_cast %208 : vector<1x2x32xf32> to vector<2x32xf32>
    %210 = arith.mulf %209, %177 : vector<2x32xf32>
    %c1_165 = arith.constant 1 : index
    %c4_166 = arith.constant 4 : index
    %c0_167 = arith.constant 0 : index
    %211 = vector.load %arg19[%c1_165, %c4_166, %c0_167] : memref<4x16x32xf32, #tpu.memory_space<vmem>>, vector<1x2x32xf32>
    %212 = vector.shape_cast %211 : vector<1x2x32xf32> to vector<2x32xf32>
    %213 = arith.addf %210, %212 : vector<2x32xf32>
    %c1_168 = arith.constant 1 : index
    %c4_169 = arith.constant 4 : index
    %c0_170 = arith.constant 0 : index
    %214 = vector.load %arg20[%c1_168, %c4_169, %c0_170] : memref<4x16x32xf32, #tpu.memory_space<vmem>>, vector<1x2x32xf32>
    %215 = vector.shape_cast %214 : vector<1x2x32xf32> to vector<2x32xf32>
    %216 = vector.shape_cast %213 : vector<2x32xf32> to vector<1x2x32xf32>
    tpu.vector_store %arg20[%c1_168, %c4_169, %c0_170], %216 {strides = array<i32>} : memref<4x16x32xf32, #tpu.memory_space<vmem>>, vector<1x2x32xf32>,
    %c2_171 = arith.constant 2 : index
    %c4_172 = arith.constant 4 : index
    %c0_173 = arith.constant 0 : index
    %217 = vector.load %arg18[%c2_171, %c4_172, %c0_173] : memref<4x16x32xf32, #tpu.memory_space<vmem>>, vector<1x2x32xf32>
    %218 = vector.shape_cast %217 : vector<1x2x32xf32> to vector<2x32xf32>
    %219 = arith.mulf %218, %186 : vector<2x32xf32>
    %c2_174 = arith.constant 2 : index
    %c4_175 = arith.constant 4 : index
    %c0_176 = arith.constant 0 : index
    %220 = vector.load %arg19[%c2_174, %c4_175, %c0_176] : memref<4x16x32xf32, #tpu.memory_space<vmem>>, vector<1x2x32xf32>
    %221 = vector.shape_cast %220 : vector<1x2x32xf32> to vector<2x32xf32>
    %222 = arith.addf %219, %221 : vector<2x32xf32>
    %c2_177 = arith.constant 2 : index
    %c4_178 = arith.constant 4 : index
    %c0_179 = arith.constant 0 : index
    %223 = vector.load %arg20[%c2_177, %c4_178, %c0_179] : memref<4x16x32xf32, #tpu.memory_space<vmem>>, vector<1x2x32xf32>
    %224 = vector.shape_cast %223 : vector<1x2x32xf32> to vector<2x32xf32>
    %225 = vector.shape_cast %222 : vector<2x32xf32> to vector<1x2x32xf32>
    tpu.vector_store %arg20[%c2_177, %c4_178, %c0_179], %225 {strides = array<i32>} : memref<4x16x32xf32, #tpu.memory_space<vmem>>, vector<1x2x32xf32>,
    %c3_180 = arith.constant 3 : index
    %c4_181 = arith.constant 4 : index
    %c0_182 = arith.constant 0 : index
    %226 = vector.load %arg18[%c3_180, %c4_181, %c0_182] : memref<4x16x32xf32, #tpu.memory_space<vmem>>, vector<1x2x32xf32>
    %227 = vector.shape_cast %226 : vector<1x2x32xf32> to vector<2x32xf32>
    %228 = arith.mulf %227, %195 : vector<2x32xf32>
    %c3_183 = arith.constant 3 : index
    %c4_184 = arith.constant 4 : index
    %c0_185 = arith.constant 0 : index
    %229 = vector.load %arg19[%c3_183, %c4_184, %c0_185] : memref<4x16x32xf32, #tpu.memory_space<vmem>>, vector<1x2x32xf32>
    %230 = vector.shape_cast %229 : vector<1x2x32xf32> to vector<2x32xf32>
    %231 = arith.addf %228, %230 : vector<2x32xf32>
    %c3_186 = arith.constant 3 : index
    %c4_187 = arith.constant 4 : index
    %c0_188 = arith.constant 0 : index
    %232 = vector.load %arg20[%c3_186, %c4_187, %c0_188] : memref<4x16x32xf32, #tpu.memory_space<vmem>>, vector<1x2x32xf32>
    %233 = vector.shape_cast %232 : vector<1x2x32xf32> to vector<2x32xf32>
    %234 = vector.shape_cast %231 : vector<2x32xf32> to vector<1x2x32xf32>
    tpu.vector_store %arg20[%c3_186, %c4_187, %c0_188], %234 {strides = array<i32>} : memref<4x16x32xf32, #tpu.memory_space<vmem>>, vector<1x2x32xf32>,
    %c0_189 = arith.constant 0 : index
    %c6_190 = arith.constant 6 : index
    %c0_191 = arith.constant 0 : index
    %235 = vector.load %arg18[%c0_189, %c6_190, %c0_191] : memref<4x16x32xf32, #tpu.memory_space<vmem>>, vector<1x2x32xf32>
    %236 = vector.shape_cast %235 : vector<1x2x32xf32> to vector<2x32xf32>
    %237 = arith.mulf %236, %204 : vector<2x32xf32>
    %c0_192 = arith.constant 0 : index
    %c6_193 = arith.constant 6 : index
    %c0_194 = arith.constant 0 : index
    %238 = vector.load %arg19[%c0_192, %c6_193, %c0_194] : memref<4x16x32xf32, #tpu.memory_space<vmem>>, vector<1x2x32xf32>
    %239 = vector.shape_cast %238 : vector<1x2x32xf32> to vector<2x32xf32>
    %240 = arith.addf %237, %239 : vector<2x32xf32>
    %c0_195 = arith.constant 0 : index
    %c6_196 = arith.constant 6 : index
    %c0_197 = arith.constant 0 : index
    %241 = vector.load %arg20[%c0_195, %c6_196, %c0_197] : memref<4x16x32xf32, #tpu.memory_space<vmem>>, vector<1x2x32xf32>
    %242 = vector.shape_cast %241 : vector<1x2x32xf32> to vector<2x32xf32>
    %243 = vector.shape_cast %240 : vector<2x32xf32> to vector<1x2x32xf32>
    tpu.vector_store %arg20[%c0_195, %c6_196, %c0_197], %243 {strides = array<i32>} : memref<4x16x32xf32, #tpu.memory_space<vmem>>, vector<1x2x32xf32>,
    %c1_198 = arith.constant 1 : index
    %c6_199 = arith.constant 6 : index
    %c0_200 = arith.constant 0 : index
    %244 = vector.load %arg18[%c1_198, %c6_199, %c0_200] : memref<4x16x32xf32, #tpu.memory_space<vmem>>, vector<1x2x32xf32>
    %245 = vector.shape_cast %244 : vector<1x2x32xf32> to vector<2x32xf32>
    %246 = arith.mulf %245, %213 : vector<2x32xf32>
    %c1_201 = arith.constant 1 : index
    %c6_202 = arith.constant 6 : index
    %c0_203 = arith.constant 0 : index
    %247 = vector.load %arg19[%c1_201, %c6_202, %c0_203] : memref<4x16x32xf32, #tpu.memory_space<vmem>>, vector<1x2x32xf32>
    %248 = vector.shape_cast %247 : vector<1x2x32xf32> to vector<2x32xf32>
    %249 = arith.addf %246, %248 : vector<2x32xf32>
    %c1_204 = arith.constant 1 : index
    %c6_205 = arith.constant 6 : index
    %c0_206 = arith.constant 0 : index
    %250 = vector.load %arg20[%c1_204, %c6_205, %c0_206] : memref<4x16x32xf32, #tpu.memory_space<vmem>>, vector<1x2x32xf32>
    %251 = vector.shape_cast %250 : vector<1x2x32xf32> to vector<2x32xf32>
    %252 = vector.shape_cast %249 : vector<2x32xf32> to vector<1x2x32xf32>
    tpu.vector_store %arg20[%c1_204, %c6_205, %c0_206], %252 {strides = array<i32>} : memref<4x16x32xf32, #tpu.memory_space<vmem>>, vector<1x2x32xf32>,
    %c2_207 = arith.constant 2 : index
    %c6_208 = arith.constant 6 : index
    %c0_209 = arith.constant 0 : index
    %253 = vector.load %arg18[%c2_207, %c6_208, %c0_209] : memref<4x16x32xf32, #tpu.memory_space<vmem>>, vector<1x2x32xf32>
    %254 = vector.shape_cast %253 : vector<1x2x32xf32> to vector<2x32xf32>
    %255 = arith.mulf %254, %222 : vector<2x32xf32>
    %c2_210 = arith.constant 2 : index
    %c6_211 = arith.constant 6 : index
    %c0_212 = arith.constant 0 : index
    %256 = vector.load %arg19[%c2_210, %c6_211, %c0_212] : memref<4x16x32xf32, #tpu.memory_space<vmem>>, vector<1x2x32xf32>
    %257 = vector.shape_cast %256 : vector<1x2x32xf32> to vector<2x32xf32>
    %258 = arith.addf %255, %257 : vector<2x32xf32>
    %c2_213 = arith.constant 2 : index
    %c6_214 = arith.constant 6 : index
    %c0_215 = arith.constant 0 : index
    %259 = vector.load %arg20[%c2_213, %c6_214, %c0_215] : memref<4x16x32xf32, #tpu.memory_space<vmem>>, vector<1x2x32xf32>
    %260 = vector.shape_cast %259 : vector<1x2x32xf32> to vector<2x32xf32>
    %261 = vector.shape_cast %258 : vector<2x32xf32> to vector<1x2x32xf32>
    tpu.vector_store %arg20[%c2_213, %c6_214, %c0_215], %261 {strides = array<i32>} : memref<4x16x32xf32, #tpu.memory_space<vmem>>, vector<1x2x32xf32>,
    %c3_216 = arith.constant 3 : index
    %c6_217 = arith.constant 6 : index
    %c0_218 = arith.constant 0 : index
    %262 = vector.load %arg18[%c3_216, %c6_217, %c0_218] : memref<4x16x32xf32, #tpu.memory_space<vmem>>, vector<1x2x32xf32>
    %263 = vector.shape_cast %262 : vector<1x2x32xf32> to vector<2x32xf32>
    %264 = arith.mulf %263, %231 : vector<2x32xf32>
    %c3_219 = arith.constant 3 : index
    %c6_220 = arith.constant 6 : index
    %c0_221 = arith.constant 0 : index
    %265 = vector.load %arg19[%c3_219, %c6_220, %c0_221] : memref<4x16x32xf32, #tpu.memory_space<vmem>>, vector<1x2x32xf32>
    %266 = vector.shape_cast %265 : vector<1x2x32xf32> to vector<2x32xf32>
    %267 = arith.addf %264, %266 : vector<2x32xf32>
    %c3_222 = arith.constant 3 : index
    %c6_223 = arith.constant 6 : index
    %c0_224 = arith.constant 0 : index
    %268 = vector.load %arg20[%c3_222, %c6_223, %c0_224] : memref<4x16x32xf32, #tpu.memory_space<vmem>>, vector<1x2x32xf32>
    %269 = vector.shape_cast %268 : vector<1x2x32xf32> to vector<2x32xf32>
    %270 = vector.shape_cast %267 : vector<2x32xf32> to vector<1x2x32xf32>
    tpu.vector_store %arg20[%c3_222, %c6_223, %c0_224], %270 {strides = array<i32>} : memref<4x16x32xf32, #tpu.memory_space<vmem>>, vector<1x2x32xf32>,
    %c0_225 = arith.constant 0 : index
    %c8 = arith.constant 8 : index
    %c0_226 = arith.constant 0 : index
    %271 = vector.load %arg18[%c0_225, %c8, %c0_226] : memref<4x16x32xf32, #tpu.memory_space<vmem>>, vector<1x2x32xf32>
    %272 = vector.shape_cast %271 : vector<1x2x32xf32> to vector<2x32xf32>
    %273 = arith.mulf %272, %240 : vector<2x32xf32>
    %c0_227 = arith.constant 0 : index
    %c8_228 = arith.constant 8 : index
    %c0_229 = arith.constant 0 : index
    %274 = vector.load %arg19[%c0_227, %c8_228, %c0_229] : memref<4x16x32xf32, #tpu.memory_space<vmem>>, vector<1x2x32xf32>
    %275 = vector.shape_cast %274 : vector<1x2x32xf32> to vector<2x32xf32>
    %276 = arith.addf %273, %275 : vector<2x32xf32>
    %c0_230 = arith.constant 0 : index
    %c8_231 = arith.constant 8 : index
    %c0_232 = arith.constant 0 : index
    %277 = vector.load %arg20[%c0_230, %c8_231, %c0_232] : memref<4x16x32xf32, #tpu.memory_space<vmem>>, vector<1x2x32xf32>
    %278 = vector.shape_cast %277 : vector<1x2x32xf32> to vector<2x32xf32>
    %279 = vector.shape_cast %276 : vector<2x32xf32> to vector<1x2x32xf32>
    tpu.vector_store %arg20[%c0_230, %c8_231, %c0_232], %279 {strides = array<i32>} : memref<4x16x32xf32, #tpu.memory_space<vmem>>, vector<1x2x32xf32>,
    %c1_233 = arith.constant 1 : index
    %c8_234 = arith.constant 8 : index
    %c0_235 = arith.constant 0 : index
    %280 = vector.load %arg18[%c1_233, %c8_234, %c0_235] : memref<4x16x32xf32, #tpu.memory_space<vmem>>, vector<1x2x32xf32>
    %281 = vector.shape_cast %280 : vector<1x2x32xf32> to vector<2x32xf32>
    %282 = arith.mulf %281, %249 : vector<2x32xf32>
    %c1_236 = arith.constant 1 : index
    %c8_237 = arith.constant 8 : index
    %c0_238 = arith.constant 0 : index
    %283 = vector.load %arg19[%c1_236, %c8_237, %c0_238] : memref<4x16x32xf32, #tpu.memory_space<vmem>>, vector<1x2x32xf32>
    %284 = vector.shape_cast %283 : vector<1x2x32xf32> to vector<2x32xf32>
    %285 = arith.addf %282, %284 : vector<2x32xf32>
    %c1_239 = arith.constant 1 : index
    %c8_240 = arith.constant 8 : index
    %c0_241 = arith.constant 0 : index
    %286 = vector.load %arg20[%c1_239, %c8_240, %c0_241] : memref<4x16x32xf32, #tpu.memory_space<vmem>>, vector<1x2x32xf32>
    %287 = vector.shape_cast %286 : vector<1x2x32xf32> to vector<2x32xf32>
    %288 = vector.shape_cast %285 : vector<2x32xf32> to vector<1x2x32xf32>
    tpu.vector_store %arg20[%c1_239, %c8_240, %c0_241], %288 {strides = array<i32>} : memref<4x16x32xf32, #tpu.memory_space<vmem>>, vector<1x2x32xf32>,
    %c2_242 = arith.constant 2 : index
    %c8_243 = arith.constant 8 : index
    %c0_244 = arith.constant 0 : index
    %289 = vector.load %arg18[%c2_242, %c8_243, %c0_244] : memref<4x16x32xf32, #tpu.memory_space<vmem>>, vector<1x2x32xf32>
    %290 = vector.shape_cast %289 : vector<1x2x32xf32> to vector<2x32xf32>
    %291 = arith.mulf %290, %258 : vector<2x32xf32>
    %c2_245 = arith.constant 2 : index
    %c8_246 = arith.constant 8 : index
    %c0_247 = arith.constant 0 : index
    %292 = vector.load %arg19[%c2_245, %c8_246, %c0_247] : memref<4x16x32xf32, #tpu.memory_space<vmem>>, vector<1x2x32xf32>
    %293 = vector.shape_cast %292 : vector<1x2x32xf32> to vector<2x32xf32>
    %294 = arith.addf %291, %293 : vector<2x32xf32>
    %c2_248 = arith.constant 2 : index
    %c8_249 = arith.constant 8 : index
    %c0_250 = arith.constant 0 : index
    %295 = vector.load %arg20[%c2_248, %c8_249, %c0_250] : memref<4x16x32xf32, #tpu.memory_space<vmem>>, vector<1x2x32xf32>
    %296 = vector.shape_cast %295 : vector<1x2x32xf32> to vector<2x32xf32>
    %297 = vector.shape_cast %294 : vector<2x32xf32> to vector<1x2x32xf32>
    tpu.vector_store %arg20[%c2_248, %c8_249, %c0_250], %297 {strides = array<i32>} : memref<4x16x32xf32, #tpu.memory_space<vmem>>, vector<1x2x32xf32>,
    %c3_251 = arith.constant 3 : index
    %c8_252 = arith.constant 8 : index
    %c0_253 = arith.constant 0 : index
    %298 = vector.load %arg18[%c3_251, %c8_252, %c0_253] : memref<4x16x32xf32, #tpu.memory_space<vmem>>, vector<1x2x32xf32>
    %299 = vector.shape_cast %298 : vector<1x2x32xf32> to vector<2x32xf32>
    %300 = arith.mulf %299, %267 : vector<2x32xf32>
    %c3_254 = arith.constant 3 : index
    %c8_255 = arith.constant 8 : index
    %c0_256 = arith.constant 0 : index
    %301 = vector.load %arg19[%c3_254, %c8_255, %c0_256] : memref<4x16x32xf32, #tpu.memory_space<vmem>>, vector<1x2x32xf32>
    %302 = vector.shape_cast %301 : vector<1x2x32xf32> to vector<2x32xf32>
    %303 = arith.addf %300, %302 : vector<2x32xf32>
    %c3_257 = arith.constant 3 : index
    %c8_258 = arith.constant 8 : index
    %c0_259 = arith.constant 0 : index
    %304 = vector.load %arg20[%c3_257, %c8_258, %c0_259] : memref<4x16x32xf32, #tpu.memory_space<vmem>>, vector<1x2x32xf32>
    %305 = vector.shape_cast %304 : vector<1x2x32xf32> to vector<2x32xf32>
    %306 = vector.shape_cast %303 : vector<2x32xf32> to vector<1x2x32xf32>
    tpu.vector_store %arg20[%c3_257, %c8_258, %c0_259], %306 {strides = array<i32>} : memref<4x16x32xf32, #tpu.memory_space<vmem>>, vector<1x2x32xf32>,
    %c0_260 = arith.constant 0 : index
    %c10 = arith.constant 10 : index
    %c0_261 = arith.constant 0 : index
    %307 = vector.load %arg18[%c0_260, %c10, %c0_261] : memref<4x16x32xf32, #tpu.memory_space<vmem>>, vector<1x2x32xf32>
    %308 = vector.shape_cast %307 : vector<1x2x32xf32> to vector<2x32xf32>
    %309 = arith.mulf %308, %276 : vector<2x32xf32>
    %c0_262 = arith.constant 0 : index
    %c10_263 = arith.constant 10 : index
    %c0_264 = arith.constant 0 : index
    %310 = vector.load %arg19[%c0_262, %c10_263, %c0_264] : memref<4x16x32xf32, #tpu.memory_space<vmem>>, vector<1x2x32xf32>
    %311 = vector.shape_cast %310 : vector<1x2x32xf32> to vector<2x32xf32>
    %312 = arith.addf %309, %311 : vector<2x32xf32>
    %c0_265 = arith.constant 0 : index
    %c10_266 = arith.constant 10 : index
    %c0_267 = arith.constant 0 : index
    %313 = vector.load %arg20[%c0_265, %c10_266, %c0_267] : memref<4x16x32xf32, #tpu.memory_space<vmem>>, vector<1x2x32xf32>
    %314 = vector.shape_cast %313 : vector<1x2x32xf32> to vector<2x32xf32>
    %315 = vector.shape_cast %312 : vector<2x32xf32> to vector<1x2x32xf32>
    tpu.vector_store %arg20[%c0_265, %c10_266, %c0_267], %315 {strides = array<i32>} : memref<4x16x32xf32, #tpu.memory_space<vmem>>, vector<1x2x32xf32>,
    %c1_268 = arith.constant 1 : index
    %c10_269 = arith.constant 10 : index
    %c0_270 = arith.constant 0 : index
    %316 = vector.load %arg18[%c1_268, %c10_269, %c0_270] : memref<4x16x32xf32, #tpu.memory_space<vmem>>, vector<1x2x32xf32>
    %317 = vector.shape_cast %316 : vector<1x2x32xf32> to vector<2x32xf32>
    %318 = arith.mulf %317, %285 : vector<2x32xf32>
    %c1_271 = arith.constant 1 : index
    %c10_272 = arith.constant 10 : index
    %c0_273 = arith.constant 0 : index
    %319 = vector.load %arg19[%c1_271, %c10_272, %c0_273] : memref<4x16x32xf32, #tpu.memory_space<vmem>>, vector<1x2x32xf32>
    %320 = vector.shape_cast %319 : vector<1x2x32xf32> to vector<2x32xf32>
    %321 = arith.addf %318, %320 : vector<2x32xf32>
    %c1_274 = arith.constant 1 : index
    %c10_275 = arith.constant 10 : index
    %c0_276 = arith.constant 0 : index
    %322 = vector.load %arg20[%c1_274, %c10_275, %c0_276] : memref<4x16x32xf32, #tpu.memory_space<vmem>>, vector<1x2x32xf32>
    %323 = vector.shape_cast %322 : vector<1x2x32xf32> to vector<2x32xf32>
    %324 = vector.shape_cast %321 : vector<2x32xf32> to vector<1x2x32xf32>
    tpu.vector_store %arg20[%c1_274, %c10_275, %c0_276], %324 {strides = array<i32>} : memref<4x16x32xf32, #tpu.memory_space<vmem>>, vector<1x2x32xf32>,
    %c2_277 = arith.constant 2 : index
    %c10_278 = arith.constant 10 : index
    %c0_279 = arith.constant 0 : index
    %325 = vector.load %arg18[%c2_277, %c10_278, %c0_279] : memref<4x16x32xf32, #tpu.memory_space<vmem>>, vector<1x2x32xf32>
    %326 = vector.shape_cast %325 : vector<1x2x32xf32> to vector<2x32xf32>
    %327 = arith.mulf %326, %294 : vector<2x32xf32>
    %c2_280 = arith.constant 2 : index
    %c10_281 = arith.constant 10 : index
    %c0_282 = arith.constant 0 : index
    %328 = vector.load %arg19[%c2_280, %c10_281, %c0_282] : memref<4x16x32xf32, #tpu.memory_space<vmem>>, vector<1x2x32xf32>
    %329 = vector.shape_cast %328 : vector<1x2x32xf32> to vector<2x32xf32>
    %330 = arith.addf %327, %329 : vector<2x32xf32>
    %c2_283 = arith.constant 2 : index
    %c10_284 = arith.constant 10 : index
    %c0_285 = arith.constant 0 : index
    %331 = vector.load %arg20[%c2_283, %c10_284, %c0_285] : memref<4x16x32xf32, #tpu.memory_space<vmem>>, vector<1x2x32xf32>
    %332 = vector.shape_cast %331 : vector<1x2x32xf32> to vector<2x32xf32>
    %333 = vector.shape_cast %330 : vector<2x32xf32> to vector<1x2x32xf32>
    tpu.vector_store %arg20[%c2_283, %c10_284, %c0_285], %333 {strides = array<i32>} : memref<4x16x32xf32, #tpu.memory_space<vmem>>, vector<1x2x32xf32>,
    %c3_286 = arith.constant 3 : index
    %c10_287 = arith.constant 10 : index
    %c0_288 = arith.constant 0 : index
    %334 = vector.load %arg18[%c3_286, %c10_287, %c0_288] : memref<4x16x32xf32, #tpu.memory_space<vmem>>, vector<1x2x32xf32>
    %335 = vector.shape_cast %334 : vector<1x2x32xf32> to vector<2x32xf32>
    %336 = arith.mulf %335, %303 : vector<2x32xf32>
    %c3_289 = arith.constant 3 : index
    %c10_290 = arith.constant 10 : index
    %c0_291 = arith.constant 0 : index
    %337 = vector.load %arg19[%c3_289, %c10_290, %c0_291] : memref<4x16x32xf32, #tpu.memory_space<vmem>>, vector<1x2x32xf32>
    %338 = vector.shape_cast %337 : vector<1x2x32xf32> to vector<2x32xf32>
    %339 = arith.addf %336, %338 : vector<2x32xf32>
    %c3_292 = arith.constant 3 : index
    %c10_293 = arith.constant 10 : index
    %c0_294 = arith.constant 0 : index
    %340 = vector.load %arg20[%c3_292, %c10_293, %c0_294] : memref<4x16x32xf32, #tpu.memory_space<vmem>>, vector<1x2x32xf32>
    %341 = vector.shape_cast %340 : vector<1x2x32xf32> to vector<2x32xf32>
    %342 = vector.shape_cast %339 : vector<2x32xf32> to vector<1x2x32xf32>
    tpu.vector_store %arg20[%c3_292, %c10_293, %c0_294], %342 {strides = array<i32>} : memref<4x16x32xf32, #tpu.memory_space<vmem>>, vector<1x2x32xf32>,
    %c0_295 = arith.constant 0 : index
    %c12 = arith.constant 12 : index
    %c0_296 = arith.constant 0 : index
    %343 = vector.load %arg18[%c0_295, %c12, %c0_296] : memref<4x16x32xf32, #tpu.memory_space<vmem>>, vector<1x2x32xf32>
    %344 = vector.shape_cast %343 : vector<1x2x32xf32> to vector<2x32xf32>
    %345 = arith.mulf %344, %312 : vector<2x32xf32>
    %c0_297 = arith.constant 0 : index
    %c12_298 = arith.constant 12 : index
    %c0_299 = arith.constant 0 : index
    %346 = vector.load %arg19[%c0_297, %c12_298, %c0_299] : memref<4x16x32xf32, #tpu.memory_space<vmem>>, vector<1x2x32xf32>
    %347 = vector.shape_cast %346 : vector<1x2x32xf32> to vector<2x32xf32>
    %348 = arith.addf %345, %347 : vector<2x32xf32>
    %c0_300 = arith.constant 0 : index
    %c12_301 = arith.constant 12 : index
    %c0_302 = arith.constant 0 : index
    %349 = vector.load %arg20[%c0_300, %c12_301, %c0_302] : memref<4x16x32xf32, #tpu.memory_space<vmem>>, vector<1x2x32xf32>
    %350 = vector.shape_cast %349 : vector<1x2x32xf32> to vector<2x32xf32>
    %351 = vector.shape_cast %348 : vector<2x32xf32> to vector<1x2x32xf32>
    tpu.vector_store %arg20[%c0_300, %c12_301, %c0_302], %351 {strides = array<i32>} : memref<4x16x32xf32, #tpu.memory_space<vmem>>, vector<1x2x32xf32>,
    %c1_303 = arith.constant 1 : index
    %c12_304 = arith.constant 12 : index
    %c0_305 = arith.constant 0 : index
    %352 = vector.load %arg18[%c1_303, %c12_304, %c0_305] : memref<4x16x32xf32, #tpu.memory_space<vmem>>, vector<1x2x32xf32>
    %353 = vector.shape_cast %352 : vector<1x2x32xf32> to vector<2x32xf32>
    %354 = arith.mulf %353, %321 : vector<2x32xf32>
    %c1_306 = arith.constant 1 : index
    %c12_307 = arith.constant 12 : index
    %c0_308 = arith.constant 0 : index
    %355 = vector.load %arg19[%c1_306, %c12_307, %c0_308] : memref<4x16x32xf32, #tpu.memory_space<vmem>>, vector<1x2x32xf32>
    %356 = vector.shape_cast %355 : vector<1x2x32xf32> to vector<2x32xf32>
    %357 = arith.addf %354, %356 : vector<2x32xf32>
    %c1_309 = arith.constant 1 : index
    %c12_310 = arith.constant 12 : index
    %c0_311 = arith.constant 0 : index
    %358 = vector.load %arg20[%c1_309, %c12_310, %c0_311] : memref<4x16x32xf32, #tpu.memory_space<vmem>>, vector<1x2x32xf32>
    %359 = vector.shape_cast %358 : vector<1x2x32xf32> to vector<2x32xf32>
    %360 = vector.shape_cast %357 : vector<2x32xf32> to vector<1x2x32xf32>
    tpu.vector_store %arg20[%c1_309, %c12_310, %c0_311], %360 {strides = array<i32>} : memref<4x16x32xf32, #tpu.memory_space<vmem>>, vector<1x2x32xf32>,
    %c2_312 = arith.constant 2 : index
    %c12_313 = arith.constant 12 : index
    %c0_314 = arith.constant 0 : index
    %361 = vector.load %arg18[%c2_312, %c12_313, %c0_314] : memref<4x16x32xf32, #tpu.memory_space<vmem>>, vector<1x2x32xf32>
    %362 = vector.shape_cast %361 : vector<1x2x32xf32> to vector<2x32xf32>
    %363 = arith.mulf %362, %330 : vector<2x32xf32>
    %c2_315 = arith.constant 2 : index
    %c12_316 = arith.constant 12 : index
    %c0_317 = arith.constant 0 : index
    %364 = vector.load %arg19[%c2_315, %c12_316, %c0_317] : memref<4x16x32xf32, #tpu.memory_space<vmem>>, vector<1x2x32xf32>
    %365 = vector.shape_cast %364 : vector<1x2x32xf32> to vector<2x32xf32>
    %366 = arith.addf %363, %365 : vector<2x32xf32>
    %c2_318 = arith.constant 2 : index
    %c12_319 = arith.constant 12 : index
    %c0_320 = arith.constant 0 : index
    %367 = vector.load %arg20[%c2_318, %c12_319, %c0_320] : memref<4x16x32xf32, #tpu.memory_space<vmem>>, vector<1x2x32xf32>
    %368 = vector.shape_cast %367 : vector<1x2x32xf32> to vector<2x32xf32>
    %369 = vector.shape_cast %366 : vector<2x32xf32> to vector<1x2x32xf32>
    tpu.vector_store %arg20[%c2_318, %c12_319, %c0_320], %369 {strides = array<i32>} : memref<4x16x32xf32, #tpu.memory_space<vmem>>, vector<1x2x32xf32>,
    %c3_321 = arith.constant 3 : index
    %c12_322 = arith.constant 12 : index
    %c0_323 = arith.constant 0 : index
    %370 = vector.load %arg18[%c3_321, %c12_322, %c0_323] : memref<4x16x32xf32, #tpu.memory_space<vmem>>, vector<1x2x32xf32>
    %371 = vector.shape_cast %370 : vector<1x2x32xf32> to vector<2x32xf32>
    %372 = arith.mulf %371, %339 : vector<2x32xf32>
    %c3_324 = arith.constant 3 : index
    %c12_325 = arith.constant 12 : index
    %c0_326 = arith.constant 0 : index
    %373 = vector.load %arg19[%c3_324, %c12_325, %c0_326] : memref<4x16x32xf32, #tpu.memory_space<vmem>>, vector<1x2x32xf32>
    %374 = vector.shape_cast %373 : vector<1x2x32xf32> to vector<2x32xf32>
    %375 = arith.addf %372, %374 : vector<2x32xf32>
    %c3_327 = arith.constant 3 : index
    %c12_328 = arith.constant 12 : index
    %c0_329 = arith.constant 0 : index
    %376 = vector.load %arg20[%c3_327, %c12_328, %c0_329] : memref<4x16x32xf32, #tpu.memory_space<vmem>>, vector<1x2x32xf32>
    %377 = vector.shape_cast %376 : vector<1x2x32xf32> to vector<2x32xf32>
    %378 = vector.shape_cast %375 : vector<2x32xf32> to vector<1x2x32xf32>
    tpu.vector_store %arg20[%c3_327, %c12_328, %c0_329], %378 {strides = array<i32>} : memref<4x16x32xf32, #tpu.memory_space<vmem>>, vector<1x2x32xf32>,
    %c0_330 = arith.constant 0 : index
    %c14 = arith.constant 14 : index
    %c0_331 = arith.constant 0 : index
    %379 = vector.load %arg18[%c0_330, %c14, %c0_331] : memref<4x16x32xf32, #tpu.memory_space<vmem>>, vector<1x2x32xf32>
    %380 = vector.shape_cast %379 : vector<1x2x32xf32> to vector<2x32xf32>
    %381 = arith.mulf %380, %348 : vector<2x32xf32>
    %c0_332 = arith.constant 0 : index
    %c14_333 = arith.constant 14 : index
    %c0_334 = arith.constant 0 : index
    %382 = vector.load %arg19[%c0_332, %c14_333, %c0_334] : memref<4x16x32xf32, #tpu.memory_space<vmem>>, vector<1x2x32xf32>
    %383 = vector.shape_cast %382 : vector<1x2x32xf32> to vector<2x32xf32>
    %384 = arith.addf %381, %383 : vector<2x32xf32>
    %c0_335 = arith.constant 0 : index
    %c14_336 = arith.constant 14 : index
    %c0_337 = arith.constant 0 : index
    %385 = vector.load %arg20[%c0_335, %c14_336, %c0_337] : memref<4x16x32xf32, #tpu.memory_space<vmem>>, vector<1x2x32xf32>
    %386 = vector.shape_cast %385 : vector<1x2x32xf32> to vector<2x32xf32>
    %387 = vector.shape_cast %384 : vector<2x32xf32> to vector<1x2x32xf32>
    tpu.vector_store %arg20[%c0_335, %c14_336, %c0_337], %387 {strides = array<i32>} : memref<4x16x32xf32, #tpu.memory_space<vmem>>, vector<1x2x32xf32>,
    %c1_338 = arith.constant 1 : index
    %c14_339 = arith.constant 14 : index
    %c0_340 = arith.constant 0 : index
    %388 = vector.load %arg18[%c1_338, %c14_339, %c0_340] : memref<4x16x32xf32, #tpu.memory_space<vmem>>, vector<1x2x32xf32>
    %389 = vector.shape_cast %388 : vector<1x2x32xf32> to vector<2x32xf32>
    %390 = arith.mulf %389, %357 : vector<2x32xf32>
    %c1_341 = arith.constant 1 : index
    %c14_342 = arith.constant 14 : index
    %c0_343 = arith.constant 0 : index
    %391 = vector.load %arg19[%c1_341, %c14_342, %c0_343] : memref<4x16x32xf32, #tpu.memory_space<vmem>>, vector<1x2x32xf32>
    %392 = vector.shape_cast %391 : vector<1x2x32xf32> to vector<2x32xf32>
    %393 = arith.addf %390, %392 : vector<2x32xf32>
    %c1_344 = arith.constant 1 : index
    %c14_345 = arith.constant 14 : index
    %c0_346 = arith.constant 0 : index
    %394 = vector.load %arg20[%c1_344, %c14_345, %c0_346] : memref<4x16x32xf32, #tpu.memory_space<vmem>>, vector<1x2x32xf32>
    %395 = vector.shape_cast %394 : vector<1x2x32xf32> to vector<2x32xf32>
    %396 = vector.shape_cast %393 : vector<2x32xf32> to vector<1x2x32xf32>
    tpu.vector_store %arg20[%c1_344, %c14_345, %c0_346], %396 {strides = array<i32>} : memref<4x16x32xf32, #tpu.memory_space<vmem>>, vector<1x2x32xf32>,
    %c2_347 = arith.constant 2 : index
    %c14_348 = arith.constant 14 : index
    %c0_349 = arith.constant 0 : index
    %397 = vector.load %arg18[%c2_347, %c14_348, %c0_349] : memref<4x16x32xf32, #tpu.memory_space<vmem>>, vector<1x2x32xf32>
    %398 = vector.shape_cast %397 : vector<1x2x32xf32> to vector<2x32xf32>
    %399 = arith.mulf %398, %366 : vector<2x32xf32>
    %c2_350 = arith.constant 2 : index
    %c14_351 = arith.constant 14 : index
    %c0_352 = arith.constant 0 : index
    %400 = vector.load %arg19[%c2_350, %c14_351, %c0_352] : memref<4x16x32xf32, #tpu.memory_space<vmem>>, vector<1x2x32xf32>
    %401 = vector.shape_cast %400 : vector<1x2x32xf32> to vector<2x32xf32>
    %402 = arith.addf %399, %401 : vector<2x32xf32>
    %c2_353 = arith.constant 2 : index
    %c14_354 = arith.constant 14 : index
    %c0_355 = arith.constant 0 : index
    %403 = vector.load %arg20[%c2_353, %c14_354, %c0_355] : memref<4x16x32xf32, #tpu.memory_space<vmem>>, vector<1x2x32xf32>
    %404 = vector.shape_cast %403 : vector<1x2x32xf32> to vector<2x32xf32>
    %405 = vector.shape_cast %402 : vector<2x32xf32> to vector<1x2x32xf32>
    tpu.vector_store %arg20[%c2_353, %c14_354, %c0_355], %405 {strides = array<i32>} : memref<4x16x32xf32, #tpu.memory_space<vmem>>, vector<1x2x32xf32>,
    %c3_356 = arith.constant 3 : index
    %c14_357 = arith.constant 14 : index
    %c0_358 = arith.constant 0 : index
    %406 = vector.load %arg18[%c3_356, %c14_357, %c0_358] : memref<4x16x32xf32, #tpu.memory_space<vmem>>, vector<1x2x32xf32>
    %407 = vector.shape_cast %406 : vector<1x2x32xf32> to vector<2x32xf32>
    %408 = arith.mulf %407, %375 : vector<2x32xf32>
    %c3_359 = arith.constant 3 : index
    %c14_360 = arith.constant 14 : index
    %c0_361 = arith.constant 0 : index
    %409 = vector.load %arg19[%c3_359, %c14_360, %c0_361] : memref<4x16x32xf32, #tpu.memory_space<vmem>>, vector<1x2x32xf32>
    %410 = vector.shape_cast %409 : vector<1x2x32xf32> to vector<2x32xf32>
    %411 = arith.addf %408, %410 : vector<2x32xf32>
    %c3_362 = arith.constant 3 : index
    %c14_363 = arith.constant 14 : index
    %c0_364 = arith.constant 0 : index
    %412 = vector.load %arg20[%c3_362, %c14_363, %c0_364] : memref<4x16x32xf32, #tpu.memory_space<vmem>>, vector<1x2x32xf32>
    %413 = vector.shape_cast %412 : vector<1x2x32xf32> to vector<2x32xf32>
    %414 = vector.shape_cast %411 : vector<2x32xf32> to vector<1x2x32xf32>
    tpu.vector_store %arg20[%c3_362, %c14_363, %c0_364], %414 {strides = array<i32>} : memref<4x16x32xf32, #tpu.memory_space<vmem>>, vector<1x2x32xf32>,
    %415 = vector.extract_strided_slice %69 {offsets = [0, 4], sizes = [16, 1], strides = [1, 1]} : vector<16x8xf32> to vector<16x1xf32>
    %c0_365 = arith.constant 0 : index
    %c0_366 = arith.constant 0 : index
    %c0_367 = arith.constant 0 : index
    %416 = vector.load %arg20[%c0_365, %c0_366, %c0_367] : memref<4x16x32xf32, #tpu.memory_space<vmem>>, vector<1x16x32xf32>
    %417 = vector.shape_cast %416 : vector<1x16x32xf32> to vector<16x32xf32>
    %418 = vector.broadcast %415 : vector<16x1xf32> to vector<16x32xf32>
    %419 = arith.mulf %418, %417 : vector<16x32xf32>
    %420 = vector.extract_strided_slice %69 {offsets = [0, 5], sizes = [16, 1], strides = [1, 1]} : vector<16x8xf32> to vector<16x1xf32>
    %c1_368 = arith.constant 1 : index
    %c0_369 = arith.constant 0 : index
    %c0_370 = arith.constant 0 : index
    %421 = vector.load %arg20[%c1_368, %c0_369, %c0_370] : memref<4x16x32xf32, #tpu.memory_space<vmem>>, vector<1x16x32xf32>
    %422 = vector.shape_cast %421 : vector<1x16x32xf32> to vector<16x32xf32>
    %423 = vector.broadcast %420 : vector<16x1xf32> to vector<16x32xf32>
    %424 = arith.mulf %423, %422 : vector<16x32xf32>
    %425 = arith.addf %419, %424 : vector<16x32xf32>
    %426 = vector.extract_strided_slice %69 {offsets = [0, 6], sizes = [16, 1], strides = [1, 1]} : vector<16x8xf32> to vector<16x1xf32>
    %c2_371 = arith.constant 2 : index
    %c0_372 = arith.constant 0 : index
    %c0_373 = arith.constant 0 : index
    %427 = vector.load %arg20[%c2_371, %c0_372, %c0_373] : memref<4x16x32xf32, #tpu.memory_space<vmem>>, vector<1x16x32xf32>
    %428 = vector.shape_cast %427 : vector<1x16x32xf32> to vector<16x32xf32>
    %429 = vector.broadcast %426 : vector<16x1xf32> to vector<16x32xf32>
    %430 = arith.mulf %429, %428 : vector<16x32xf32>
    %431 = arith.addf %425, %430 : vector<16x32xf32>
    %432 = vector.extract_strided_slice %69 {offsets = [0, 7], sizes = [16, 1], strides = [1, 1]} : vector<16x8xf32> to vector<16x1xf32>
    %c3_374 = arith.constant 3 : index
    %c0_375 = arith.constant 0 : index
    %c0_376 = arith.constant 0 : index
    %433 = vector.load %arg20[%c3_374, %c0_375, %c0_376] : memref<4x16x32xf32, #tpu.memory_space<vmem>>, vector<1x16x32xf32>
    %434 = vector.shape_cast %433 : vector<1x16x32xf32> to vector<16x32xf32>
    %435 = vector.broadcast %432 : vector<16x1xf32> to vector<16x32xf32>
    %436 = arith.mulf %435, %434 : vector<16x32xf32>
    %437 = arith.addf %431, %436 : vector<16x32xf32>
    %c0_377 = arith.constant 0 : index
    %c0_378 = arith.constant 0 : index
    %438 = vector.load %arg13[%c0_377, %c0_378] : memref<1x32xf32, #tpu.memory_space<vmem>>, vector<1x32xf32>
    %439 = vector.broadcast %438 : vector<1x32xf32> to vector<16x32xf32>
    %440 = arith.mulf %55, %439 : vector<16x32xf32>
    %cst_379 = arith.constant 0.000000e+00 : f32
    %441 = vector.broadcast %cst_379 : f32 to vector<16x32xf32>
    %442 = arith.subf %441, %23 : vector<16x32xf32>
    %443 = math.exp %442 : vector<16x32xf32>
    %cst_380 = arith.constant 1.000000e+00 : f32
    %444 = vector.broadcast %cst_380 : f32 to vector<16x32xf32>
    %445 = arith.addf %444, %443 : vector<16x32xf32>
    %446 = tpu.reciprocal %445 {approx = true} : vector<16x32xf32> -> vector<16x32xf32>
    %447 = arith.mulf %23, %446 : vector<16x32xf32>
    %448 = arith.addf %437, %440 : vector<16x32xf32>
    %449 = arith.mulf %448, %447 : vector<16x32xf32>
    %c0_381 = arith.constant 0 : index
    %c0_382 = arith.constant 0 : index
    %450 = vector.load %arg14[%c0_381, %c0_382] : memref<32x16xf32, #tpu.memory_space<vmem>>, vector<32x16xf32>
    %cst_383 = arith.constant dense<0.000000e+00> : vector<16x16xf32>
    %451 = tpu.matmul %449, %450, %cst_383 {dimension_numbers = #tpu.dot_dimension_numbers<[1], [0], [0], [1], [0, 0, 1, 1], [], []>} : vector<16x32xf32>, vector<32x16xf32>, vector<16x16xf32> -> vector<16x16xf32>
    %c0_384 = arith.constant 0 : index
    %c0_385 = arith.constant 0 : index
    %452 = vector.load %arg15[%c0_384, %c0_385] : memref<1x16xf32, #tpu.memory_space<vmem>>, vector<1x16xf32>
    %453 = vector.broadcast %452 : vector<1x16xf32> to vector<16x16xf32>
    %454 = arith.addf %451, %453 : vector<16x16xf32>
    %455 = arith.addf %454, %0 : vector<16x16xf32>
    %c0_386 = arith.constant 0 : index
    %c0_387 = arith.constant 0 : index
    %456 = vector.load %arg16[%c0_386, %c0_387] : memref<16x16xf32, #tpu.memory_space<vmem>>, vector<16x16xf32>
    tpu.vector_store %arg16[%c0_386, %c0_387], %455 {strides = array<i32>} : memref<16x16xf32, #tpu.memory_space<vmem>>, vector<16x16xf32>,
    return
  }
  func.func @transform_0(%arg0: i32) -> (i32, i32) {
    %c0_i32 = arith.constant 0 : i32
    %c0_i32_0 = arith.constant 0 : i32
    %c0_i32_1 = arith.constant 0 : i32
    return %c0_i32, %c0_i32_0 : i32, i32
  }
  func.func @transform_1(%arg0: i32) -> (i32, i32) {
    %c0_i32 = arith.constant 0 : i32
    %c0_i32_0 = arith.constant 0 : i32
    %c0_i32_1 = arith.constant 0 : i32
    return %c0_i32, %c0_i32_0 : i32, i32
  }
  func.func @transform_2(%arg0: i32) -> (i32, i32) {
    %c0_i32 = arith.constant 0 : i32
    %c0_i32_0 = arith.constant 0 : i32
    %c0_i32_1 = arith.constant 0 : i32
    return %c0_i32, %c0_i32_0 : i32, i32
  }
  func.func @transform_3(%arg0: i32) -> (i32, i32) {
    %c0_i32 = arith.constant 0 : i32
    %c0_i32_0 = arith.constant 0 : i32
    %c0_i32_1 = arith.constant 0 : i32
    return %c0_i32, %c0_i32_0 : i32, i32
  }
  func.func @transform_4(%arg0: i32) -> (i32, i32) {
    %c0_i32 = arith.constant 0 : i32
    %c0_i32_0 = arith.constant 0 : i32
    %c0_i32_1 = arith.constant 0 : i32
    return %c0_i32, %c0_i32_0 : i32, i32
  }
  func.func @transform_5(%arg0: i32) -> (i32, i32) {
    %c0_i32 = arith.constant 0 : i32
    %c0_i32_0 = arith.constant 0 : i32
    %c0_i32_1 = arith.constant 0 : i32
    return %c0_i32, %c0_i32_0 : i32, i32
  }
  func.func @transform_6(%arg0: i32) -> (i32, i32) {
    %c0_i32 = arith.constant 0 : i32
    %c0_i32_0 = arith.constant 0 : i32
    %c0_i32_1 = arith.constant 0 : i32
    return %c0_i32, %c0_i32_0 : i32, i32
  }
  func.func @transform_7(%arg0: i32) -> (i32, i32) {
    %c0_i32 = arith.constant 0 : i32
    %c0_i32_0 = arith.constant 0 : i32
    %c0_i32_1 = arith.constant 0 : i32
    return %c0_i32, %c0_i32_0 : i32, i32
  }
  func.func @transform_8(%arg0: i32) -> (i32, i32) {
    %c0_i32 = arith.constant 0 : i32
    %c0_i32_0 = arith.constant 0 : i32
    %c0_i32_1 = arith.constant 0 : i32
    return %c0_i32, %c0_i32_0 : i32, i32
  }
  func.func @transform_9(%arg0: i32) -> (i32, i32) {
    %c0_i32 = arith.constant 0 : i32
    %c0_i32_0 = arith.constant 0 : i32
    %c0_i32_1 = arith.constant 0 : i32
    return %c0_i32, %c0_i32_0 : i32, i32
  }
  func.func @transform_10(%arg0: i32) -> (i32, i32) {
    %c0_i32 = arith.constant 0 : i32
    %c0_i32_0 = arith.constant 0 : i32
    %c0_i32_1 = arith.constant 0 : i32
    return %c0_i32, %c0_i32_0 : i32, i32
  }
  func.func @transform_11(%arg0: i32) -> (i32, i32) {
    %c0_i32 = arith.constant 0 : i32
    %c0_i32_0 = arith.constant 0 : i32
    %c0_i32_1 = arith.constant 0 : i32
    return %c0_i32, %c0_i32_0 : i32, i32
  }
  func.func @transform_12(%arg0: i32) -> (i32, i32) {
    %c0_i32 = arith.constant 0 : i32
    %c0_i32_0 = arith.constant 0 : i32
    %c0_i32_1 = arith.constant 0 : i32
    return %c0_i32, %c0_i32_0 : i32, i32
  }
  func.func @transform_13(%arg0: i32) -> (i32, i32) {
    %c0_i32 = arith.constant 0 : i32
    %c0_i32_0 = arith.constant 0 : i32
    %c0_i32_1 = arith.constant 0 : i32
    return %c0_i32, %c0_i32_0 : i32, i32
  }
  func.func @transform_14(%arg0: i32) -> (i32, i32) {
    %c0_i32 = arith.constant 0 : i32
    %c0_i32_0 = arith.constant 0 : i32
    %c0_i32_1 = arith.constant 0 : i32
    return %c0_i32, %c0_i32_0 : i32, i32
  }
  func.func @transform_15(%arg0: i32) -> (i32, i32) {
    %c0_i32 = arith.constant 0 : i32
    %c0_i32_0 = arith.constant 0 : i32
    %c0_i32_1 = arith.constant 0 : i32
    return %c0_i32, %c0_i32_0 : i32, i32
  }
}

</mosaic_0001>

<llo_original>
// kernel: residual_block_forward.1
$region0: #{residual_block_forward.1}
  #allocation0 [shape = 'u32[]', space=smem, size = 0x4, offset = 0x4, fixed_abs, tag = 'smem constant byte address 0x4 - core index']
  #allocation1 [shape = 'u32[72,128]{1,0:T(1,128)}', space=vmem, size = 0x9000, scoped, tag = 'internal scratch']
  #allocation2 [shape = 'f32[22,32]{1,0:T(8,128)}', space=vmem, size = 0x3000, scoped, tag = 'scratch operand']
  #allocation3 [shape = 'f32[4,16,32]{2,1,0:T(8,128)}', space=vmem, size = 0x8000, scoped, tag = 'scratch operand']
  #allocation4 [shape = 'f32[4,16,32]{2,1,0:T(8,128)}', space=vmem, size = 0x8000, scoped, tag = 'scratch operand']
  #allocation5 [shape = 'f32[4,16,32]{2,1,0:T(8,128)}', space=vmem, size = 0x8000, scoped, tag = 'scratch operand']
  %s0 = inlined_call_operand.vmem [shape: f32[16,16], index: 0, kind: input, shape index: {}]
  %s1 = inlined_call_operand.vmem [shape: f32[1,16], index: 1, kind: input, shape index: {}]
  %s2 = inlined_call_operand.vmem [shape: f32[16,32], index: 2, kind: input, shape index: {}]
  %s3 = inlined_call_operand.vmem [shape: f32[1,32], index: 3, kind: input, shape index: {}]
  %s4 = inlined_call_operand.vmem [shape: f32[16,32], index: 4, kind: input, shape index: {}]
  %s5 = inlined_call_operand.vmem [shape: f32[1,32], index: 5, kind: input, shape index: {}]
  %s6 = inlined_call_operand.vmem [shape: f32[4,32], index: 6, kind: input, shape index: {}]
  %s7 = inlined_call_operand.vmem [shape: f32[1,32], index: 7, kind: input, shape index: {}]
  %s8 = inlined_call_operand.vmem [shape: f32[32,32], index: 8, kind: input, shape index: {}]
  %s9 = inlined_call_operand.vmem [shape: f32[1,32], index: 9, kind: input, shape index: {}]
  %s10 = inlined_call_operand.vmem [shape: f32[32,8], index: 10, kind: input, shape index: {}]
  %s11 = inlined_call_operand.vmem [shape: f32[4,32], index: 11, kind: input, shape index: {}]
  %s12 = inlined_call_operand.vmem [shape: f32[1,32], index: 12, kind: input, shape index: {}]
  %s13 = inlined_call_operand.vmem [shape: f32[32,16], index: 13, kind: input, shape index: {}]
  %s14 = inlined_call_operand.vmem [shape: f32[1,16], index: 14, kind: input, shape index: {}]
  %s15 = inlined_call_operand.vmem [shape: f32[16,16], index: 15, kind: output, shape index: {}]
  %s16 = sld [smem:[#allocation0]]
  $region70: #{residual_block_forward.1} parent=0
    _
  %s18 = ssub.s32 1, %s16
  %s19 = scalar_select 0, %s18, %s16
  // Predicated region
  $region2: #{residual_block_forward.1} parent=0 // pred_check
    _
  $region3: #{residual_block_forward.1} parent=0 // pred_check_branch
    %21 = sbr.rel (0) target = $region5
  $region4: #{residual_block_forward.1} parent=0 // pred_region
    _
  $region5: #{residual_block_forward.1} parent=0 // pred_fallthru
    _
  // Predicated region
  $region6: #{residual_block_forward.1} parent=0 // pred_check
    _
  $region7: #{residual_block_forward.1} parent=0 // pred_check_branch
    %23 = sbr.rel (0) target = $region9
  $region8: #{residual_block_forward.1} parent=0 // pred_region
    _
  $region9: #{residual_block_forward.1} parent=0 // pred_fallthru
    _
  // Predicated region
  $region10: #{residual_block_forward.1} parent=0 // pred_check
    _
  $region11: #{residual_block_forward.1} parent=0 // pred_check_branch
    %25 = sbr.rel (0) target = $region13
  $region12: #{residual_block_forward.1} parent=0 // pred_region
    _
  $region13: #{residual_block_forward.1} parent=0 // pred_fallthru
    _
  // Predicated region
  $region14: #{residual_block_forward.1} parent=0 // pred_check
    _
  $region15: #{residual_block_forward.1} parent=0 // pred_check_branch
    %27 = sbr.rel (0) target = $region17
  $region16: #{residual_block_forward.1} parent=0 // pred_region
    _
  $region17: #{residual_block_forward.1} parent=0 // pred_fallthru
    _
  // Predicated region
  $region18: #{residual_block_forward.1} parent=0 // pred_check
    _
  $region19: #{residual_block_forward.1} parent=0 // pred_check_branch
    %29 = sbr.rel (0) target = $region21
  $region20: #{residual_block_forward.1} parent=0 // pred_region
    _
  $region21: #{residual_block_forward.1} parent=0 // pred_fallthru
    _
  // Predicated region
  $region22: #{residual_block_forward.1} parent=0 // pred_check
    _
  $region23: #{residual_block_forward.1} parent=0 // pred_check_branch
    %31 = sbr.rel (0) target = $region25
  $region24: #{residual_block_forward.1} parent=0 // pred_region
    _
  $region25: #{residual_block_forward.1} parent=0 // pred_fallthru
    _
  // Predicated region
  $region26: #{residual_block_forward.1} parent=0 // pred_check
    _
  $region27: #{residual_block_forward.1} parent=0 // pred_check_branch
    %33 = sbr.rel (0) target = $region29
  $region28: #{residual_block_forward.1} parent=0 // pred_region
    _
  $region29: #{residual_block_forward.1} parent=0 // pred_fallthru
    _
  // Predicated region
  $region30: #{residual_block_forward.1} parent=0 // pred_check
    _
  $region31: #{residual_block_forward.1} parent=0 // pred_check_branch
    %35 = sbr.rel (0) target = $region33
  $region32: #{residual_block_forward.1} parent=0 // pred_region
    _
  $region33: #{residual_block_forward.1} parent=0 // pred_fallthru
    _
  // Predicated region
  $region34: #{residual_block_forward.1} parent=0 // pred_check
    _
  $region35: #{residual_block_forward.1} parent=0 // pred_check_branch
    %37 = sbr.rel (0) target = $region37
  $region36: #{residual_block_forward.1} parent=0 // pred_region
    _
  $region37: #{residual_block_forward.1} parent=0 // pred_fallthru
    _
  // Predicated region
  $region38: #{residual_block_forward.1} parent=0 // pred_check
    _
  $region39: #{residual_block_forward.1} parent=0 // pred_check_branch
    %39 = sbr.rel (0) target = $region41
  $region40: #{residual_block_forward.1} parent=0 // pred_region
    _
  $region41: #{residual_block_forward.1} parent=0 // pred_fallthru
    _
  // Predicated region
  $region42: #{residual_block_forward.1} parent=0 // pred_check
    _
  $region43: #{residual_block_forward.1} parent=0 // pred_check_branch
    %41 = sbr.rel (0) target = $region45
  $region44: #{residual_block_forward.1} parent=0 // pred_region
    _
  $region45: #{residual_block_forward.1} parent=0 // pred_fallthru
    _
  // Predicated region
  $region46: #{residual_block_forward.1} parent=0 // pred_check
    _
  $region47: #{residual_block_forward.1} parent=0 // pred_check_branch
    %43 = sbr.rel (0) target = $region49
  $region48: #{residual_block_forward.1} parent=0 // pred_region
    _
  $region49: #{residual_block_forward.1} parent=0 // pred_fallthru
    _
  // Predicated region
  $region50: #{residual_block_forward.1} parent=0 // pred_check
    _
  $region51: #{residual_block_forward.1} parent=0 // pred_check_branch
    %45 = sbr.rel (0) target = $region53
  $region52: #{residual_block_forward.1} parent=0 // pred_region
    _
  $region53: #{residual_block_forward.1} parent=0 // pred_fallthru
    _
  // Predicated region
  $region54: #{residual_block_forward.1} parent=0 // pred_check
    _
  $region55: #{residual_block_forward.1} parent=0 // pred_check_branch
    %47 = sbr.rel (0) target = $region57
  $region56: #{residual_block_forward.1} parent=0 // pred_region
    _
  $region57: #{residual_block_forward.1} parent=0 // pred_fallthru
    _
  // Predicated region
  $region58: #{residual_block_forward.1} parent=0 // pred_check
    _
  $region59: #{residual_block_forward.1} parent=0 // pred_check_branch
    %49 = sbr.rel (0) target = $region61
  $region60: #{residual_block_forward.1} parent=0 // pred_region
    _
  $region61: #{residual_block_forward.1} parent=0 // pred_fallthru
    _
  %v50 = vld [vmem:[%s0] sm:$0xff]
  %v51 = vld [vmem:[%s0 + $0x8] sm:$0xff]
  %v52 = vmul.f32 %v50, %v50
  %v53 = vmul.f32 %v51, %v51
  %vm54 = vcmask 130048
  %v55 = vsel %vm54, %v52, 0.0
  %56 = vadd.xlane.f32.xlu0 %v55
  %v57 = vpop.xlane.xlu0 %56
  %v58 = vsel %vm54, %v53, 0.0
  %59 = vadd.xlane.f32.xlu0 %v58
  %v60 = vpop.xlane.xlu0 %59
  %v61 = vrcp.pop 16.0
  %v62 = vmul.f32 16.0, %v61
  %v63 = vsub.f32 1.0, %v62
  %v64 = vmul.f32 %v61, %v63
  %v65 = vadd.f32 %v61, %v64
  %vm66 = vweird.f32 %v61
  %v67 = vsel %vm66, %v61, %v65
  %v68 = vmul.f32 %v57, %v67
  %v69 = vmul.f32 %v60, %v67
  %v70 = vadd.f32 %v68, 1e-05
  %v71 = vadd.f32 %v69, 1e-05
  %v72 = vrsqrt.pop %v70
  %v73 = vmul.f32 %v72, %v70
  %v74 = vmul.f32 %v73, %v72
  %v75 = vmul.f32 0.5, %v74
  %v76 = vsub.f32 1.5, %v75
  %v77 = vmul.f32 %v72, %v76
  %vm78 = vweird.f32 %v70
  %vm79 = vweird.f32 %v72
  %vm80 = vmor %vm78, %vm79
  %v81 = vsel %vm80, %v72, %v77
  %v82 = vrsqrt.pop %v71
  %v83 = vmul.f32 %v82, %v71
  %v84 = vmul.f32 %v83, %v82
  %v85 = vmul.f32 0.5, %v84
  %v86 = vsub.f32 1.5, %v85
  %v87 = vmul.f32 %v82, %v86
  %vm88 = vweird.f32 %v71
  %vm89 = vweird.f32 %v82
  %vm90 = vmor %vm88, %vm89
  %v91 = vsel %vm90, %v82, %v87
  %v92 = vmul.f32 %v50, %v81
  %v93 = vmul.f32 %v51, %v91
  %v94 = vld [vmem:[%s1] sm:$0x1]
  %v96 = vperm.slane %v94, 0
  %v98 = vmul.f32 %v92, %v96
  %v99 = vmul.f32 %v93, %v96
  %v100 = vld [vmem:[%s2] sm:$0xff]
  %v101 = vld [vmem:[%s2 + $0x8] sm:$0xff]
  %v102 = vld [vmem:[%s3] sm:$0x1]
  %v104 = vperm.slane %v102, 0
  %v107 = vsel %vm54, %v98, 0
  %v110 = vsel %vm54, %v99, 0
  %112 = vmatpush.msra.mxu0 0.0
  %113 = vmatpush.msra.mxu0 0.0
  %114 = vmatpush.msra.mxu0 0.0
  %115 = vmatpush.msra.mxu0 0.0
  %116 = vmatpush.msra.mxu0 0.0
  %117 = vmatpush.msra.mxu0 0.0
  %118 = vmatpush.msra.mxu0 0.0
  %119 = vmatpush.msra.mxu0 0.0
  %120 = vmatpush.msra.mxu0 0.0
  %121 = vmatpush.msra.mxu0 0.0
  %122 = vmatpush.msra.mxu0 0.0
  %123 = vmatpush.msra.mxu0 0.0
  %124 = vmatpush.msra.mxu0 0.0
  %125 = vmatpush.msra.mxu0 0.0
  %126 = vmatpush.msra.mxu0 %v101
  %127 = vmatpush.msra.mxu0 %v100
  %128 = vmatmul.f32.gmra.mxu0 %v107
  %v129 = vpop.f32.mrf.mxu0
  %v130 = vadd.f32 %v104, %v129
  %131 = vmatmul.f32.gmra.mxu0 %v110
  %v132 = vpop.f32.mrf.mxu0
  %v133 = vadd.f32 %v104, %v132
  %134 = vdwg.mxu0
  %v135 = vld [vmem:[%s4] sm:$0xff]
  %v136 = vld [vmem:[%s4 + $0x8] sm:$0xff]
  %v137 = vld [vmem:[%s5] sm:$0x1]
  %v139 = vperm.slane %v137, 0
  %141 = vmatpush.msra.mxu0 0.0
  %142 = vmatpush.msra.mxu0 0.0
  %143 = vmatpush.msra.mxu0 0.0
  %144 = vmatpush.msra.mxu0 0.0
  %145 = vmatpush.msra.mxu0 0.0
  %146 = vmatpush.msra.mxu0 0.0
  %147 = vmatpush.msra.mxu0 0.0
  %148 = vmatpush.msra.mxu0 0.0
  %149 = vmatpush.msra.mxu0 0.0
  %150 = vmatpush.msra.mxu0 0.0
  %151 = vmatpush.msra.mxu0 0.0
  %152 = vmatpush.msra.mxu0 0.0
  %153 = vmatpush.msra.mxu0 0.0
  %154 = vmatpush.msra.mxu0 0.0
  %155 = vmatpush.msra.mxu0 %v136
  %156 = vmatpush.msra.mxu0 %v135
  %157 = vmatmul.f32.gmra.mxu0 %v107
  %v158 = vpop.f32.mrf.mxu0
  %v159 = vadd.f32 %v139, %v158
  %160 = vmatmul.f32.gmra.mxu0 %v110
  %v161 = vpop.f32.mrf.mxu0
  %v162 = vadd.f32 %v139, %v161
  %163 = vdwg.mxu0
  %vm164 = vcmask 259072
  %165 = vst.msk [vmem:[#allocation2] sm:$0x3f] %vm164, 0.0
  %vm166 = vcmask 261120
  %167 = vst.msk [vmem:[#allocation2 + $0x6] sm:$0xff] %vm166, %v130
  %168 = vst.msk [vmem:[#allocation2 + $0xe] sm:$0xff] %vm166, %v133
  %v169 = vld [vmem:[%s7] sm:$0x1]
  %v170 = vld [vmem:[#allocation2] sm:$0xff]
  %v171 = vld [vmem:[#allocation2 + $0x8] sm:$0xff]
  %v172 = vld [vmem:[%s6] sm:$0x1]
  %v173 = vperm.slane %v172, 0
  %v174 = vmul.f32 %v170, %v173
  %v175 = vmul.f32 %v171, %v173
  %v177 = vperm.slane %v169, 0
  %v179 = vadd.f32 %v177, %v174
  %v180 = vadd.f32 %v177, %v175
  %v181 = vld [vmem:[#allocation2 + $0x2] sm:$0xff]
  %v182 = vld [vmem:[#allocation2 + $0xa] sm:$0xff]
  %v183 = vld [vmem:[%s6 + $0x1] sm:$0x1]
  %v184 = vperm.slane %v183, 0
  %v185 = vmul.f32 %v181, %v184
  %v186 = vmul.f32 %v182, %v184
  %v187 = vadd.f32 %v179, %v185
  %v188 = vadd.f32 %v180, %v186
  %v189 = vld [vmem:[#allocation2 + $0x4] sm:$0xff]
  %v190 = vld [vmem:[#allocation2 + $0xc] sm:$0xff]
  %v191 = vld [vmem:[%s6 + $0x2] sm:$0x1]
  %v192 = vperm.slane %v191, 0
  %v193 = vmul.f32 %v189, %v192
  %v194 = vmul.f32 %v190, %v192
  %v195 = vadd.f32 %v187, %v193
  %v196 = vadd.f32 %v188, %v194
  %v197 = vld [vmem:[#allocation2 + $0x6] sm:$0xff]
  %v198 = vld [vmem:[#allocation2 + $0xe] sm:$0xff]
  %v199 = vld [vmem:[%s6 + $0x3] sm:$0x1]
  %v200 = vperm.slane %v199, 0
  %v201 = vmul.f32 %v197, %v200
  %v202 = vmul.f32 %v198, %v200
  %v203 = vadd.f32 %v195, %v201
  %v204 = vadd.f32 %v196, %v202
  %v205 = vsub.f32 0.0, %v203
  %v206 = vsub.f32 0.0, %v204
  %v207 = vmul.f32 %v205, 1.442695
  %v208 = vpow.pop %v207
  %v209 = vmul.f32 %v206, 1.442695
  %v210 = vpow.pop %v209
  %v211 = vadd.f32 %v208, 1.0
  %v212 = vadd.f32 %v210, 1.0
  %v213 = vrcp.pop %v211
  %v214 = vrcp.pop %v212
  %v215 = vmul.f32 %v203, %v213
  %v216 = vmul.f32 %v204, %v214
  %v217 = vld [vmem:[%s8] sm:$0xff]
  %v218 = vld [vmem:[%s8 + $0x8] sm:$0xff]
  %v219 = vld [vmem:[%s8 + $0x10] sm:$0xff]
  %v220 = vld [vmem:[%s8 + $0x18] sm:$0xff]
  %v221 = vld [vmem:[%s9] sm:$0x1]
  %v223 = vperm.slane %v221, 0
  %v226 = vsel %vm166, %v215, 0
  %v229 = vsel %vm166, %v216, 0
  %231 = vmatpush.msra.mxu0 0.0
  %232 = vmatpush.msra.mxu0 0.0
  %233 = vmatpush.msra.mxu0 0.0
  %234 = vmatpush.msra.mxu0 0.0
  %235 = vmatpush.msra.mxu0 0.0
  %236 = vmatpush.msra.mxu0 0.0
  %237 = vmatpush.msra.mxu0 0.0
  %238 = vmatpush.msra.mxu0 0.0
  %239 = vmatpush.msra.mxu0 0.0
  %240 = vmatpush.msra.mxu0 0.0
  %241 = vmatpush.msra.mxu0 0.0
  %242 = vmatpush.msra.mxu0 0.0
  %243 = vmatpush.msra.mxu0 %v220
  %244 = vmatpush.msra.mxu0 %v219
  %245 = vmatpush.msra.mxu0 %v218
  %246 = vmatpush.msra.mxu0 %v217
  %247 = vmatmul.f32.gmra.mxu0 %v226
  %v248 = vpop.f32.mrf.mxu0
  %v249 = vadd.f32 %v223, %v248
  %250 = vmatmul.f32.gmra.mxu0 %v229
  %v251 = vpop.f32.mrf.mxu0
  %v252 = vadd.f32 %v223, %v251
  %253 = vdwg.mxu0
  %vm254 = vcmp.gt.f32.partialorder %v249, 20.0
  %vm255 = vcmp.gt.f32.partialorder %v252, 20.0
  %v256 = vmin.f32 %v249, 20.0
  %v257 = vmin.f32 %v252, 20.0
  %v258 = vmul.f32 %v256, 1.442695
  %v259 = vpow.pop %v258
  %v260 = vmul.f32 %v257, 1.442695
  %v261 = vpow.pop %v260
  %v262 = vadd.f32 %v259, 1.0
  %v263 = vlog2.pop %v262
  %v264 = vmul.f32 %v263, 0.6931472
  %v265 = vmul.f32 -0.5, %v259
  %v266 = vadd.f32 %v265, 1.0
  %v267 = vmul.f32 %v266, %v259
  %v268 = vand.u32 2147483647, %v259
  %vm269 = vcmp.lt.f32.partialorder %v268, 0.0004427343
  %v270 = vsel %vm269, %v267, %v264
  %v271 = vadd.f32 %v261, 1.0
  %v272 = vlog2.pop %v271
  %v273 = vmul.f32 %v272, 0.6931472
  %v274 = vmul.f32 -0.5, %v261
  %v275 = vadd.f32 %v274, 1.0
  %v276 = vmul.f32 %v275, %v261
  %v277 = vand.u32 2147483647, %v261
  %vm278 = vcmp.lt.f32.partialorder %v277, 0.0004427343
  %v279 = vsel %vm278, %v276, %v273
  %v280 = vsel %vm254, %v249, %v270
  %v281 = vsel %vm255, %v252, %v279
  %v282 = vld [vmem:[%s10] sm:$0xff]
  %v283 = vld [vmem:[%s10 + $0x8] sm:$0xff]
  %v284 = vld [vmem:[%s10 + $0x10] sm:$0xff]
  %v285 = vld [vmem:[%s10 + $0x18] sm:$0xff]
  %286 = vmatpush.msra.mxu0 0.0
  %287 = vmatpush.msra.mxu0 0.0
  %288 = vmatpush.msra.mxu0 0.0
  %289 = vmatpush.msra.mxu0 0.0
  %290 = vmatpush.msra.mxu0 0.0
  %291 = vmatpush.msra.mxu0 0.0
  %292 = vmatpush.msra.mxu0 0.0
  %293 = vmatpush.msra.mxu0 0.0
  %294 = vmatpush.msra.mxu0 0.0
  %295 = vmatpush.msra.mxu0 0.0
  %296 = vmatpush.msra.mxu0 0.0
  %297 = vmatpush.msra.mxu0 0.0
  %298 = vmatpush.msra.mxu0 %v285
  %299 = vmatpush.msra.mxu0 %v284
  %300 = vmatpush.msra.mxu0 %v283
  %301 = vmatpush.msra.mxu0 %v282
  %302 = vmatmul.f32.gmra.mxu0 %v226
  %v303 = vpop.f32.mrf.mxu0
  %v304 = vadd.f32 0.0, %v303
  %305 = vmatmul.f32.gmra.mxu0 %v229
  %v306 = vpop.f32.mrf.mxu0
  %v307 = vadd.f32 0.0, %v306
  %308 = vdwg.mxu0
  %v309 = vmul.f32 %v280, %v215
  %v310 = vmul.f32 %v281, %v216
  %v311 = vld [vmem:[%s11] sm:$0x1]
  %v312 = vperm.slane %v311, 0
  %v313 = vmul.f32 %v280, %v312
  %v314 = vmul.f32 %v281, %v312
  %v315 = vmul.f32 %v313, 1.442695
  %v316 = vpow.pop %v315
  %v317 = vmul.f32 %v314, 1.442695
  %v318 = vpow.pop %v317
  %319 = vst.msk [vmem:[#allocation3] sm:$0xff] %vm166, %v316
  %320 = vst.msk [vmem:[#allocation3 + $0x8] sm:$0xff] %vm166, %v318
  %322 = vset.pattern.permute.xlu0 0
  %323 = vperm.xlu0 %322, %v304
  %v324 = vpop.permute.xlu0 %323
  %327 = vset.pattern.permute.xlu0 0
  %328 = vperm.xlu0 %327, %v307
  %v329 = vpop.permute.xlu0 %328
  %v331 = vmul.f32 %v309, %v324
  %v332 = vmul.f32 %v310, %v329
  %333 = vst.msk [vmem:[#allocation4] sm:$0xff] %vm166, %v331
  %334 = vst.msk [vmem:[#allocation4 + $0x8] sm:$0xff] %vm166, %v332
  %v335 = vld [vmem:[%s11 + $0x1] sm:$0x1]
  %v336 = vperm.slane %v335, 0
  %v337 = vmul.f32 %v280, %v336
  %v338 = vmul.f32 %v281, %v336
  %v339 = vmul.f32 %v337, 1.442695
  %v340 = vpow.pop %v339
  %v341 = vmul.f32 %v338, 1.442695
  %v342 = vpow.pop %v341
  %s343 = scalar_lea.vmem [#allocation3], 16
  %344 = vst.msk [vmem:[%s343] sm:$0xff] %vm166, %v340
  %345 = vst.msk [vmem:[%s343 + $0x8] sm:$0xff] %vm166, %v342
  %346 = vset.pattern.permute.xlu0 1
  %347 = vperm.xlu0 %346, %v304
  %v348 = vpop.permute.xlu0 %347
  %350 = vset.pattern.permute.xlu0 1
  %351 = vperm.xlu0 %350, %v307
  %v352 = vpop.permute.xlu0 %351
  %v354 = vmul.f32 %v309, %v348
  %v355 = vmul.f32 %v310, %v352
  %s356 = scalar_lea.vmem [#allocation4], 16
  %357 = vst.msk [vmem:[%s356] sm:$0xff] %vm166, %v354
  %358 = vst.msk [vmem:[%s356 + $0x8] sm:$0xff] %vm166, %v355
  %v359 = vld [vmem:[%s11 + $0x2] sm:$0x1]
  %v360 = vperm.slane %v359, 0
  %v361 = vmul.f32 %v280, %v360
  %v362 = vmul.f32 %v281, %v360
  %v363 = vmul.f32 %v361, 1.442695
  %v364 = vpow.pop %v363
  %v365 = vmul.f32 %v362, 1.442695
  %v366 = vpow.pop %v365
  %s367 = scalar_lea.vmem [#allocation3], 32
  %368 = vst.msk [vmem:[%s367] sm:$0xff] %vm166, %v364
  %369 = vst.msk [vmem:[%s367 + $0x8] sm:$0xff] %vm166, %v366
  %370 = vset.pattern.permute.xlu0 2
  %371 = vperm.xlu0 %370, %v304
  %v372 = vpop.permute.xlu0 %371
  %374 = vset.pattern.permute.xlu0 2
  %375 = vperm.xlu0 %374, %v307
  %v376 = vpop.permute.xlu0 %375
  %v378 = vmul.f32 %v309, %v372
  %v379 = vmul.f32 %v310, %v376
  %s380 = scalar_lea.vmem [#allocation4], 32
  %381 = vst.msk [vmem:[%s380] sm:$0xff] %vm166, %v378
  %382 = vst.msk [vmem:[%s380 + $0x8] sm:$0xff] %vm166, %v379
  %v383 = vld [vmem:[%s11 + $0x3] sm:$0x1]
  %v384 = vperm.slane %v383, 0
  %v385 = vmul.f32 %v280, %v384
  %v386 = vmul.f32 %v281, %v384
  %v387 = vmul.f32 %v385, 1.442695
  %v388 = vpow.pop %v387
  %v389 = vmul.f32 %v386, 1.442695
  %v390 = vpow.pop %v389
  %s391 = scalar_lea.vmem [#allocation3], 48
  %392 = vst.msk [vmem:[%s391] sm:$0xff] %vm166, %v388
  %393 = vst.msk [vmem:[%s391 + $0x8] sm:$0xff] %vm166, %v390
  %394 = vset.pattern.permute.xlu0 3
  %395 = vperm.xlu0 %394, %v304
  %v396 = vpop.permute.xlu0 %395
  %398 = vset.pattern.permute.xlu0 3
  %399 = vperm.xlu0 %398, %v307
  %v400 = vpop.permute.xlu0 %399
  %v402 = vmul.f32 %v309, %v396
  %v403 = vmul.f32 %v310, %v400
  %s404 = scalar_lea.vmem [#allocation4], 48
  %405 = vst.msk [vmem:[%s404] sm:$0xff] %vm166, %v402
  %406 = vst.msk [vmem:[%s404 + $0x8] sm:$0xff] %vm166, %v403
  %v407 = vld [vmem:[#allocation3] sm:$0x3]
  %v408 = vmul.f32 %v407, 0.0
  %v409 = vld [vmem:[#allocation4] sm:$0x3]
  %v410 = vadd.f32 %v408, %v409
  %vm411 = vcmask 254976
  %412 = vst.msk [vmem:[#allocation5] sm:$0x3] %vm411, %v410
  %v413 = vld [vmem:[%s343] sm:$0x3]
  %v414 = vmul.f32 %v413, 0.0
  %v415 = vld [vmem:[%s356] sm:$0x3]
  %v416 = vadd.f32 %v414, %v415
  %s417 = scalar_lea.vmem [#allocation5], 16
  %418 = vst.msk [vmem:[%s417] sm:$0x3] %vm411, %v416
  %v419 = vld [vmem:[%s367] sm:$0x3]
  %v420 = vmul.f32 %v419, 0.0
  %v421 = vld [vmem:[%s380] sm:$0x3]
  %v422 = vadd.f32 %v420, %v421
  %s423 = scalar_lea.vmem [#allocation5], 32
  %424 = vst.msk [vmem:[%s423] sm:$0x3] %vm411, %v422
  %v425 = vld [vmem:[%s391] sm:$0x3]
  %v426 = vmul.f32 %v425, 0.0
  %v427 = vld [vmem:[%s404] sm:$0x3]
  %v428 = vadd.f32 %v426, %v427
  %s429 = scalar_lea.vmem [#allocation5], 48
  %430 = vst.msk [vmem:[%s429] sm:$0x3] %vm411, %v428
  %v431 = vld [vmem:[#allocation3 + $0x2] sm:$0x3]
  %v432 = vmul.f32 %v431, %v410
  %v433 = vld [vmem:[#allocation4 + $0x2] sm:$0x3]
  %v434 = vadd.f32 %v432, %v433
  %435 = vst.msk [vmem:[#allocation5 + $0x2] sm:$0x3] %vm411, %v434
  %v436 = vld [vmem:[%s343 + $0x2] sm:$0x3]
  %v437 = vmul.f32 %v436, %v416
  %v438 = vld [vmem:[%s356 + $0x2] sm:$0x3]
  %v439 = vadd.f32 %v437, %v438
  %440 = vst.msk [vmem:[%s417 + $0x2] sm:$0x3] %vm411, %v439
  %v441 = vld [vmem:[%s367 + $0x2] sm:$0x3]
  %v442 = vmul.f32 %v441, %v422
  %v443 = vld [vmem:[%s380 + $0x2] sm:$0x3]
  %v444 = vadd.f32 %v442, %v443
  %445 = vst.msk [vmem:[%s423 + $0x2] sm:$0x3] %vm411, %v444
  %v446 = vld [vmem:[%s391 + $0x2] sm:$0x3]
  %v447 = vmul.f32 %v446, %v428
  %v448 = vld [vmem:[%s404 + $0x2] sm:$0x3]
  %v449 = vadd.f32 %v447, %v448
  %450 = vst.msk [vmem:[%s429 + $0x2] sm:$0x3] %vm411, %v449
  %v451 = vld [vmem:[#allocation3 + $0x4] sm:$0x3]
  %v452 = vmul.f32 %v451, %v434
  %v453 = vld [vmem:[#allocation4 + $0x4] sm:$0x3]
  %v454 = vadd.f32 %v452, %v453
  %455 = vst.msk [vmem:[#allocation5 + $0x4] sm:$0x3] %vm411, %v454
  %v456 = vld [vmem:[%s343 + $0x4] sm:$0x3]
  %v457 = vmul.f32 %v456, %v439
  %v458 = vld [vmem:[%s356 + $0x4] sm:$0x3]
  %v459 = vadd.f32 %v457, %v458
  %460 = vst.msk [vmem:[%s417 + $0x4] sm:$0x3] %vm411, %v459
  %v461 = vld [vmem:[%s367 + $0x4] sm:$0x3]
  %v462 = vmul.f32 %v461, %v444
  %v463 = vld [vmem:[%s380 + $0x4] sm:$0x3]
  %v464 = vadd.f32 %v462, %v463
  %465 = vst.msk [vmem:[%s423 + $0x4] sm:$0x3] %vm411, %v464
  %v466 = vld [vmem:[%s391 + $0x4] sm:$0x3]
  %v467 = vmul.f32 %v466, %v449
  %v468 = vld [vmem:[%s404 + $0x4] sm:$0x3]
  %v469 = vadd.f32 %v467, %v468
  %470 = vst.msk [vmem:[%s429 + $0x4] sm:$0x3] %vm411, %v469
  %v471 = vld [vmem:[#allocation3 + $0x6] sm:$0x3]
  %v472 = vmul.f32 %v471, %v454
  %v473 = vld [vmem:[#allocation4 + $0x6] sm:$0x3]
  %v474 = vadd.f32 %v472, %v473
  %475 = vst.msk [vmem:[#allocation5 + $0x6] sm:$0x3] %vm411, %v474
  %v476 = vld [vmem:[%s343 + $0x6] sm:$0x3]
  %v477 = vmul.f32 %v476, %v459
  %v478 = vld [vmem:[%s356 + $0x6] sm:$0x3]
  %v479 = vadd.f32 %v477, %v478
  %480 = vst.msk [vmem:[%s417 + $0x6] sm:$0x3] %vm411, %v479
  %v481 = vld [vmem:[%s367 + $0x6] sm:$0x3]
  %v482 = vmul.f32 %v481, %v464
  %v483 = vld [vmem:[%s380 + $0x6] sm:$0x3]
  %v484 = vadd.f32 %v482, %v483
  %485 = vst.msk [vmem:[%s423 + $0x6] sm:$0x3] %vm411, %v484
  %v486 = vld [vmem:[%s391 + $0x6] sm:$0x3]
  %v487 = vmul.f32 %v486, %v469
  %v488 = vld [vmem:[%s404 + $0x6] sm:$0x3]
  %v489 = vadd.f32 %v487, %v488
  %490 = vst.msk [vmem:[%s429 + $0x6] sm:$0x3] %vm411, %v489
  %v491 = vld [vmem:[#allocation3 + $0x8] sm:$0x3]
  %v492 = vmul.f32 %v491, %v474
  %v493 = vld [vmem:[#allocation4 + $0x8] sm:$0x3]
  %v494 = vadd.f32 %v492, %v493
  %495 = vst.msk [vmem:[#allocation5 + $0x8] sm:$0x3] %vm411, %v494
  %v496 = vld [vmem:[%s343 + $0x8] sm:$0x3]
  %v497 = vmul.f32 %v496, %v479
  %v498 = vld [vmem:[%s356 + $0x8] sm:$0x3]
  %v499 = vadd.f32 %v497, %v498
  %500 = vst.msk [vmem:[%s417 + $0x8] sm:$0x3] %vm411, %v499
  %v501 = vld [vmem:[%s367 + $0x8] sm:$0x3]
  %v502 = vmul.f32 %v501, %v484
  %v503 = vld [vmem:[%s380 + $0x8] sm:$0x3]
  %v504 = vadd.f32 %v502, %v503
  %505 = vst.msk [vmem:[%s423 + $0x8] sm:$0x3] %vm411, %v504
  %v506 = vld [vmem:[%s391 + $0x8] sm:$0x3]
  %v507 = vmul.f32 %v506, %v489
  %v508 = vld [vmem:[%s404 + $0x8] sm:$0x3]
  %v509 = vadd.f32 %v507, %v508
  %510 = vst.msk [vmem:[%s429 + $0x8] sm:$0x3] %vm411, %v509
  %v511 = vld [vmem:[#allocation3 + $0xa] sm:$0x3]
  %v512 = vmul.f32 %v511, %v494
  %v513 = vld [vmem:[#allocation4 + $0xa] sm:$0x3]
  %v514 = vadd.f32 %v512, %v513
  %515 = vst.msk [vmem:[#allocation5 + $0xa] sm:$0x3] %vm411, %v514
  %v516 = vld [vmem:[%s343 + $0xa] sm:$0x3]
  %v517 = vmul.f32 %v516, %v499
  %v518 = vld [vmem:[%s356 + $0xa] sm:$0x3]
  %v519 = vadd.f32 %v517, %v518
  %520 = vst.msk [vmem:[%s417 + $0xa] sm:$0x3] %vm411, %v519
  %v521 = vld [vmem:[%s367 + $0xa] sm:$0x3]
  %v522 = vmul.f32 %v521, %v504
  %v523 = vld [vmem:[%s380 + $0xa] sm:$0x3]
  %v524 = vadd.f32 %v522, %v523
  %525 = vst.msk [vmem:[%s423 + $0xa] sm:$0x3] %vm411, %v524
  %v526 = vld [vmem:[%s391 + $0xa] sm:$0x3]
  %v527 = vmul.f32 %v526, %v509
  %v528 = vld [vmem:[%s404 + $0xa] sm:$0x3]
  %v529 = vadd.f32 %v527, %v528
  %530 = vst.msk [vmem:[%s429 + $0xa] sm:$0x3] %vm411, %v529
  %v531 = vld [vmem:[#allocation3 + $0xc] sm:$0x3]
  %v532 = vmul.f32 %v531, %v514
  %v533 = vld [vmem:[#allocation4 + $0xc] sm:$0x3]
  %v534 = vadd.f32 %v532, %v533
  %535 = vst.msk [vmem:[#allocation5 + $0xc] sm:$0x3] %vm411, %v534
  %v536 = vld [vmem:[%s343 + $0xc] sm:$0x3]
  %v537 = vmul.f32 %v536, %v519
  %v538 = vld [vmem:[%s356 + $0xc] sm:$0x3]
  %v539 = vadd.f32 %v537, %v538
  %540 = vst.msk [vmem:[%s417 + $0xc] sm:$0x3] %vm411, %v539
  %v541 = vld [vmem:[%s367 + $0xc] sm:$0x3]
  %v542 = vmul.f32 %v541, %v524
  %v543 = vld [vmem:[%s380 + $0xc] sm:$0x3]
  %v544 = vadd.f32 %v542, %v543
  %545 = vst.msk [vmem:[%s423 + $0xc] sm:$0x3] %vm411, %v544
  %v546 = vld [vmem:[%s391 + $0xc] sm:$0x3]
  %v547 = vmul.f32 %v546, %v529
  %v548 = vld [vmem:[%s404 + $0xc] sm:$0x3]
  %v549 = vadd.f32 %v547, %v548
  %550 = vst.msk [vmem:[%s429 + $0xc] sm:$0x3] %vm411, %v549
  %v551 = vld [vmem:[#allocation3 + $0xe] sm:$0x3]
  %v552 = vmul.f32 %v551, %v534
  %v553 = vld [vmem:[#allocation4 + $0xe] sm:$0x3]
  %v554 = vadd.f32 %v552, %v553
  %555 = vst.msk [vmem:[#allocation5 + $0xe] sm:$0x3] %vm411, %v554
  %v556 = vld [vmem:[%s343 + $0xe] sm:$0x3]
  %v557 = vmul.f32 %v556, %v539
  %v558 = vld [vmem:[%s356 + $0xe] sm:$0x3]
  %v559 = vadd.f32 %v557, %v558
  %560 = vst.msk [vmem:[%s417 + $0xe] sm:$0x3] %vm411, %v559
  %v561 = vld [vmem:[%s367 + $0xe] sm:$0x3]
  %v562 = vmul.f32 %v561, %v544
  %v563 = vld [vmem:[%s380 + $0xe] sm:$0x3]
  %v564 = vadd.f32 %v562, %v563
  %565 = vst.msk [vmem:[%s423 + $0xe] sm:$0x3] %vm411, %v564
  %v566 = vld [vmem:[%s391 + $0xe] sm:$0x3]
  %v567 = vmul.f32 %v566, %v549
  %v568 = vld [vmem:[%s404 + $0xe] sm:$0x3]
  %v569 = vadd.f32 %v567, %v568
  %570 = vst.msk [vmem:[%s429 + $0xe] sm:$0x3] %vm411, %v569
  %v571 = vld [vmem:[#allocation5] sm:$0xff]
  %v572 = vld [vmem:[#allocation5 + $0x8] sm:$0xff]
  %573 = vset.pattern.permute.xlu0 4
  %574 = vperm.xlu0 %573, %v304
  %v575 = vpop.permute.xlu0 %574
  %577 = vset.pattern.permute.xlu0 4
  %578 = vperm.xlu0 %577, %v307
  %v579 = vpop.permute.xlu0 %578
  %v581 = vmul.f32 %v575, %v571
  %v582 = vmul.f32 %v579, %v572
  %v583 = vld [vmem:[%s417] sm:$0xff]
  %v584 = vld [vmem:[%s417 + $0x8] sm:$0xff]
  %585 = vset.pattern.permute.xlu0 5
  %586 = vperm.xlu0 %585, %v304
  %v587 = vpop.permute.xlu0 %586
  %589 = vset.pattern.permute.xlu0 5
  %590 = vperm.xlu0 %589, %v307
  %v591 = vpop.permute.xlu0 %590
  %v593 = vmul.f32 %v587, %v583
  %v594 = vmul.f32 %v591, %v584
  %v595 = vadd.f32 %v581, %v593
  %v596 = vadd.f32 %v582, %v594
  %v597 = vld [vmem:[%s423] sm:$0xff]
  %v598 = vld [vmem:[%s423 + $0x8] sm:$0xff]
  %599 = vset.pattern.permute.xlu0 6
  %600 = vperm.xlu0 %599, %v304
  %v601 = vpop.permute.xlu0 %600
  %603 = vset.pattern.permute.xlu0 6
  %604 = vperm.xlu0 %603, %v307
  %v605 = vpop.permute.xlu0 %604
  %v607 = vmul.f32 %v601, %v597
  %v608 = vmul.f32 %v605, %v598
  %v609 = vadd.f32 %v595, %v607
  %v610 = vadd.f32 %v596, %v608
  %v611 = vld [vmem:[%s429] sm:$0xff]
  %v612 = vld [vmem:[%s429 + $0x8] sm:$0xff]
  %613 = vset.pattern.permute.xlu0 7
  %614 = vperm.xlu0 %613, %v304
  %v615 = vpop.permute.xlu0 %614
  %617 = vset.pattern.permute.xlu0 7
  %618 = vperm.xlu0 %617, %v307
  %v619 = vpop.permute.xlu0 %618
  %v621 = vmul.f32 %v615, %v611
  %v622 = vmul.f32 %v619, %v612
  %v623 = vadd.f32 %v609, %v621
  %v624 = vadd.f32 %v610, %v622
  %v625 = vld [vmem:[%s12] sm:$0x1]
  %v627 = vperm.slane %v625, 0
  %v629 = vmul.f32 %v215, %v627
  %v630 = vmul.f32 %v216, %v627
  %v631 = vsub.f32 0.0, %v159
  %v632 = vsub.f32 0.0, %v162
  %v633 = vmul.f32 %v631, 1.442695
  %v634 = vpow.pop %v633
  %v635 = vmul.f32 %v632, 1.442695
  %v636 = vpow.pop %v635
  %v637 = vadd.f32 %v634, 1.0
  %v638 = vadd.f32 %v636, 1.0
  %v639 = vrcp.pop %v637
  %v640 = vrcp.pop %v638
  %v641 = vmul.f32 %v159, %v639
  %v642 = vmul.f32 %v162, %v640
  %v643 = vadd.f32 %v623, %v629
  %v644 = vadd.f32 %v624, %v630
  %v645 = vmul.f32 %v643, %v641
  %v646 = vmul.f32 %v644, %v642
  %v647 = vld [vmem:[%s13] sm:$0xff]
  %v648 = vld [vmem:[%s13 + $0x8] sm:$0xff]
  %v649 = vld [vmem:[%s13 + $0x10] sm:$0xff]
  %v650 = vld [vmem:[%s13 + $0x18] sm:$0xff]
  %v651 = vld [vmem:[%s14] sm:$0x1]
  %v653 = vperm.slane %v651, 0
  %v656 = vsel %vm166, %v645, 0
  %v659 = vsel %vm166, %v646, 0
  %661 = vmatpush.msra.mxu0 0.0
  %662 = vmatpush.msra.mxu0 0.0
  %663 = vmatpush.msra.mxu0 0.0
  %664 = vmatpush.msra.mxu0 0.0
  %665 = vmatpush.msra.mxu0 0.0
  %666 = vmatpush.msra.mxu0 0.0
  %667 = vmatpush.msra.mxu0 0.0
  %668 = vmatpush.msra.mxu0 0.0
  %669 = vmatpush.msra.mxu0 0.0
  %670 = vmatpush.msra.mxu0 0.0
  %671 = vmatpush.msra.mxu0 0.0
  %672 = vmatpush.msra.mxu0 0.0
  %673 = vmatpush.msra.mxu0 %v650
  %674 = vmatpush.msra.mxu0 %v649
  %675 = vmatpush.msra.mxu0 %v648
  %676 = vmatpush.msra.mxu0 %v647
  %677 = vmatmul.f32.gmra.mxu0 %v656
  %v678 = vpop.f32.mrf.mxu0
  %v679 = vadd.f32 %v653, %v678
  %680 = vmatmul.f32.gmra.mxu0 %v659
  %v681 = vpop.f32.mrf.mxu0
  %v682 = vadd.f32 %v653, %v681
  %683 = vdwg.mxu0
  %v684 = vadd.f32 %v679, %v50
  %v685 = vadd.f32 %v682, %v51
  %686 = vst.msk [vmem:[%s15] sm:$0xff] %vm54, %v684
  %687 = vst.msk [vmem:[%s15 + $0x8] sm:$0xff] %vm54, %v685
  // Predicated region
  $region62: #{residual_block_forward.1} parent=0 // pred_check
    _
  $region63: #{residual_block_forward.1} parent=0 // pred_check_branch
    %689 = sbr.rel (0) target = $region65
  $region64: #{residual_block_forward.1} parent=0 // pred_region
    _
  $region65: #{residual_block_forward.1} parent=0 // pred_fallthru
    _
  // Predicated region
  $region66: #{residual_block_forward.1} parent=0 // pred_check
    _
  $region67: #{residual_block_forward.1} parent=0 // pred_check_branch
    %691 = sbr.rel (0) target = $region69
  $region68: #{residual_block_forward.1} parent=0 // pred_region
    _
  $region69: #{residual_block_forward.1} parent=0 // pred_fallthru
    _

</llo_original>
